<compile_context>
chip_gen: v6e
topology: v6e:2x2x1
jax: 0.10.0
libtpu: 0.0.40
codegen_flags: <defaults>
</compile_context>

<pallas_src>
import jax
import jax.numpy as jnp
from jax import lax
from jax.experimental import pallas as pl
from jax.experimental.pallas import tpu as pltpu


def self_attention_kernel(x_ref, w_ref, b_ref, o_ref):
    # x_ref: (Bt, D, S) f32   w_ref: (3D, D) bf16 = [Wq*scale; Wk; Wv]
    # b_ref: (3D, 1) f32 column   o_ref: (Bt, D, S)
    bt, d, s = x_ref.shape
    w = w_ref[...]                                            # resident bf16 fused weight
    # Hoist the bias broadcast out of the batch loop (JAX does not CSE broadcasts).
    bias = jnp.broadcast_to(b_ref[...], (3 * d, s))           # (3D, S) f32

    def body(i, carry):
        x_bf = x_ref[i].astype(jnp.bfloat16)                  # (D, S), no input transpose

        # Fused QKV projection: one wide bf16 MXU matmul, f32 accumulation, f32 bias add.
        qkv = jnp.dot(w, x_bf, preferred_element_type=jnp.float32) + bias   # (3D, S) f32

        q_ds = qkv[:d].astype(jnp.bfloat16)                   # (D, S)  (1/sqrt(D) pre-folded)
        k_sd = qkv[d:2 * d].astype(jnp.bfloat16).T            # (S, D)  bf16 before the transpose
        v_ds = qkv[2 * d:].astype(jnp.bfloat16)               # (D, S)

        # Transposed scores: rows = keys, cols = queries.  Plain A@B -> MXU-native.
        st = jnp.dot(k_sd, q_ds, preferred_element_type=jnp.float32)        # (Sk, Sq) f32

        # Numerically-stable softmax over keys (axis 0); math kept in f32.
        m = jnp.max(st, axis=0, keepdims=True)                # (1, Sq)
        p = jnp.exp(st - m)                                   # (Sk, Sq) f32, EUP exp
        l = jnp.sum(p, axis=0, keepdims=True)                 # (1, Sq)

        # out (D, Sq) = V_ds @ P; softmax normalization folded onto the small output.
        out = jnp.dot(v_ds, p.astype(jnp.bfloat16), preferred_element_type=jnp.float32)
        out = out * pl.reciprocal(l, approx=True)             # (1, Sq) broadcast along D

        o_ref[i] = out.astype(o_ref.dtype)                    # lane-dense (D, S) store
        return carry

    lax.fori_loop(0, bt, body, 0)


def _pick_block_b(b):
    """Cap the batch sub-block at 2 (v7x: 64 MiB VMEM) while keeping >= 2 grid steps
    whenever possible so both v7x TensorCores stay busy."""
    if b % 2 == 0 and b // 2 >= 2:
        return 2
    return 1


def self_attention_feature(x, wq, bq, wk, bk, wv, bv, *, block_b=None):
    """x: (B, D, S) float32.  Weights: (D, D) (PyTorch nn.Linear layout).  Biases: (1, D).
    Returns (B, D, S), matching SelfAttention_feature.forward."""
    B, D, S = x.shape
    if block_b is None:
        block_b = _pick_block_b(B)
    assert B % block_b == 0

    scale = 1.0 / float(D) ** 0.5
    # Fold the 1/sqrt(D) score scale into the Q projection (weights AND bias), fuse the
    # QKV parameters, and pre-cast the fused weights to bf16 (accumulation stays f32).
    w_fused = jnp.concatenate([wq * scale, wk, wv], axis=0).astype(jnp.bfloat16)   # (3D, D)
    b_fused = jnp.concatenate([jnp.reshape(bq, (D, 1)) * scale,
                               jnp.reshape(bk, (D, 1)),
                               jnp.reshape(bv, (D, 1))], axis=0)                    # (3D, 1) f32

    x_spec = pl.BlockSpec((block_b, D, S), lambda i: (i, 0, 0))
    w_spec = pl.BlockSpec((3 * D, D), lambda i: (0, 0))
    bias_spec = pl.BlockSpec((3 * D, 1), lambda i: (0, 0))
    # Output kept in x.dtype (f32) to preserve module semantics; consumers that
    # tolerate bf16 can flip this dtype to halve HBM writeback on v6e.
    o_spec = pl.BlockSpec((block_b, D, S), lambda i: (i, 0, 0))

    return pl.pallas_call(
        self_attention_kernel,
        out_shape=jax.ShapeDtypeStruct((B, D, S), x.dtype),
        grid_spec=pltpu.PrefetchScalarGridSpec(
            num_scalar_prefetch=0,
            grid=(B // block_b,),
            in_specs=[x_spec, w_spec, bias_spec],
            out_specs=o_spec,
        ),
        compiler_params=pltpu.CompilerParams(
            dimension_semantics=("parallel",),
            # fori_loop bounds live ranges to ~one element's temporaries; 32 MiB is
            # comfortable on all of v5e / v6e / v7x.
            vmem_limit_bytes=32 * 1024 * 1024,
        ),
    )(x, w_fused, b_fused)


def reference(x, wq, bq, wk, bk, wv, bv):
    """Pure-JAX f32 reference mirroring the PyTorch forward exactly."""
    xt = jnp.transpose(x, (0, 2, 1))                      # (B, S, D)
    q = xt @ wq.T + bq
    k = xt @ wk.T + bk
    v = xt @ wv.T + bv
    d = xt.shape[-1]
    score = jnp.einsum("bsd,btd->bst", q, k) / jnp.sqrt(jnp.float32(d))
    attn = jax.nn.softmax(score, axis=-1)
    out = jnp.einsum("bst,btd->bsd", attn, v)
    return jnp.transpose(out, (0, 2, 1))                  # (B, D, S)


if __name__ == "__main__":
    # Small analog of the module's B x 256 x 512 feature map, chosen large enough to
    # exercise the (8,128)-aligned, lane-dense layout and both the grid and the
    # in-kernel fori_loop (B=4 -> block_b=2, 2 grid steps).
    B, D, S = 4, 128, 256

    key = jax.random.PRNGKey(0)
    kx, kq, kbq, kk, kbk, kv, kbv = jax.random.split(key, 7)

    x = jax.random.normal(kx, (B, D, S), dtype=jnp.float32)

    bound = 1.0 / (D ** 0.5)
    wq = jax.random.uniform(kq, (D, D), jnp.float32, -bound, bound)
    bq = jax.random.uniform(kbq, (1, D), jnp.float32, -bound, bound)
    wk = jax.random.uniform(kk, (D, D), jnp.float32, -bound, bound)
    bk = jax.random.uniform(kbk, (1, D), jnp.float32, -bound, bound)
    wv = jax.random.uniform(kv, (D, D), jnp.float32, -bound, bound)
    bv = jax.random.uniform(kbv, (1, D), jnp.float32, -bound, bound)

    out = self_attention_feature(x, wq, bq, wk, bk, wv, bv)
    out = jax.block_until_ready(out)

    ref = reference(x, wq, bq, wk, bk, wv, bv)
    assert out.shape == (B, D, S)
    # Tolerance reflects bf16 inputs to all three matmuls (f32 accumulation) plus the
    # EUP approx reciprocal in the softmax denominator (~1e-3 relative).
    assert jnp.allclose(out, ref, atol=3e-2, rtol=3e-2), "mismatch vs reference"

    print("KERNEL_OK")
</pallas_src>

<mosaic_0001>
module attributes {stable_mosaic.version = 11 : i64} {
  func.func @self_attention_kernel(%arg0: i32, %arg1: memref<2x128x256xf32, #tpu.memory_space<vmem>>, %arg2: memref<384x128xbf16, #tpu.memory_space<vmem>>, %arg3: memref<384x1xf32, #tpu.memory_space<vmem>>, %arg4: memref<2x128x256xf32, #tpu.memory_space<vmem>>) attributes {dimension_semantics = [#tpu.dimension_semantics<parallel>], iteration_bounds = array<i64: 2>, scalar_prefetch = 0 : i64, scratch_operands = 0 : i64, tpu.core_type = #tpu.core_type<tc>, window_params = [{transform_indices = @transform_0, window_bounds = array<i64: 2, 128, 256>}, {pipeline_mode = #tpu.pipeline_mode<synchronous>, transform_indices = @transform_1, window_bounds = array<i64: 384, 128>}, {pipeline_mode = #tpu.pipeline_mode<synchronous>, transform_indices = @transform_2, window_bounds = array<i64: 384, 1>}, {transform_indices = @transform_3, window_bounds = array<i64: 2, 128, 256>}]} {
    %c0 = arith.constant 0 : index
    %c0_0 = arith.constant 0 : index
    %0 = vector.load %arg2[%c0, %c0_0] : memref<384x128xbf16, #tpu.memory_space<vmem>>, vector<384x128xbf16>
    %c0_1 = arith.constant 0 : index
    %c0_2 = arith.constant 0 : index
    %1 = vector.load %arg3[%c0_1, %c0_2] : memref<384x1xf32, #tpu.memory_space<vmem>>, vector<384x1xf32>
    %2 = vector.shape_cast %1 : vector<384x1xf32> to vector<384x1xf32>
    %3 = vector.broadcast %2 : vector<384x1xf32> to vector<384x256xf32>
    %c0_i32 = arith.constant 0 : i32
    %c2_i32 = arith.constant 2 : i32
    %4 = arith.addi %c0_i32, %c2_i32 : i32
    %c1_i32 = arith.constant 1 : i32
    scf.for %arg5 = %c0_i32 to %4 step %c1_i32  : i32 {
      %5 = arith.index_cast %arg5 : i32 to index
      %c0_4 = arith.constant 0 : index
      %c0_5 = arith.constant 0 : index
      %6 = vector.load %arg1[%5, %c0_4, %c0_5] : memref<2x128x256xf32, #tpu.memory_space<vmem>>, vector<1x128x256xf32>
      %7 = vector.shape_cast %6 : vector<1x128x256xf32> to vector<128x256xf32>
      %8 = arith.truncf %7 : vector<128x256xf32> to vector<128x256xbf16>
      %cst = arith.constant dense<0.000000e+00> : vector<384x256xf32>
      %9 = tpu.matmul %0, %8, %cst {dimension_numbers = #tpu.dot_dimension_numbers<[1], [0], [0], [1], [0, 0, 1, 1], [], []>} : vector<384x128xbf16>, vector<128x256xbf16>, vector<384x256xf32> -> vector<384x256xf32>
      %10 = arith.addf %9, %3 : vector<384x256xf32>
      %11 = vector.extract_strided_slice %10 {offsets = [0, 0], sizes = [128, 256], strides = [1, 1]} : vector<384x256xf32> to vector<128x256xf32>
      %12 = arith.truncf %11 : vector<128x256xf32> to vector<128x256xbf16>
      %13 = vector.extract_strided_slice %10 {offsets = [128, 0], sizes = [128, 256], strides = [1, 1]} : vector<384x256xf32> to vector<128x256xf32>
      %14 = arith.truncf %13 : vector<128x256xf32> to vector<128x256xbf16>
      %15 = tpu.transpose %14, [1, 0] : vector<128x256xbf16> -> vector<256x128xbf16>
      %16 = vector.extract_strided_slice %10 {offsets = [256, 0], sizes = [128, 256], strides = [1, 1]} : vector<384x256xf32> to vector<128x256xf32>
      %17 = arith.truncf %16 : vector<128x256xf32> to vector<128x256xbf16>
      %cst_6 = arith.constant dense<0.000000e+00> : vector<256x256xf32>
      %18 = tpu.matmul %15, %12, %cst_6 {dimension_numbers = #tpu.dot_dimension_numbers<[1], [0], [0], [1], [0, 0, 1, 1], [], []>} : vector<256x128xbf16>, vector<128x256xbf16>, vector<256x256xf32> -> vector<256x256xf32>
      %cst_7 = arith.constant dense<0xFF800000> : vector<256xf32>
      %19 = vector.multi_reduction <maximumf>, %18, %cst_7 [0] : vector<256x256xf32> to vector<256xf32>
      %20 = vector.shape_cast %19 : vector<256xf32> to vector<1x256xf32>
      %21 = vector.broadcast %20 : vector<1x256xf32> to vector<256x256xf32>
      %22 = arith.subf %18, %21 : vector<256x256xf32>
      %23 = math.exp %22 : vector<256x256xf32>
      %cst_8 = arith.constant dense<0.000000e+00> : vector<256xf32>
      %24 = vector.multi_reduction <add>, %23, %cst_8 [0] : vector<256x256xf32> to vector<256xf32>
      %25 = vector.shape_cast %24 : vector<256xf32> to vector<1x256xf32>
      %26 = arith.truncf %23 : vector<256x256xf32> to vector<256x256xbf16>
      %cst_9 = arith.constant dense<0.000000e+00> : vector<128x256xf32>
      %27 = tpu.matmul %17, %26, %cst_9 {dimension_numbers = #tpu.dot_dimension_numbers<[1], [0], [0], [1], [0, 0, 1, 1], [], []>} : vector<128x256xbf16>, vector<256x256xbf16>, vector<128x256xf32> -> vector<128x256xf32>
      %28 = tpu.reciprocal %25 {approx = true} : vector<1x256xf32> -> vector<1x256xf32>
      %29 = vector.broadcast %28 : vector<1x256xf32> to vector<128x256xf32>
      %30 = arith.mulf %27, %29 : vector<128x256xf32>
      %31 = arith.index_cast %arg5 : i32 to index
      %c0_10 = arith.constant 0 : index
      %c0_11 = arith.constant 0 : index
      %32 = vector.load %arg4[%31, %c0_10, %c0_11] : memref<2x128x256xf32, #tpu.memory_space<vmem>>, vector<1x128x256xf32>
      %33 = vector.shape_cast %32 : vector<1x128x256xf32> to vector<128x256xf32>
      %34 = vector.shape_cast %30 : vector<128x256xf32> to vector<1x128x256xf32>
      tpu.vector_store %arg4[%31, %c0_10, %c0_11], %34 {strides = array<i32>} : memref<2x128x256xf32, #tpu.memory_space<vmem>>, vector<1x128x256xf32>,
    }
    %c2_i32_3 = arith.constant 2 : i32
    return
  }
  func.func @transform_0(%arg0: i32) -> (i32, i32, i32) {
    %c0_i32 = arith.constant 0 : i32
    %c0_i32_0 = arith.constant 0 : i32
    %c0_i32_1 = arith.constant 0 : i32
    return %arg0, %c0_i32, %c0_i32_0 : i32, i32, i32
  }
  func.func @transform_1(%arg0: i32) -> (i32, i32) {
    %c0_i32 = arith.constant 0 : i32
    %c0_i32_0 = arith.constant 0 : i32
    %c0_i32_1 = arith.constant 0 : i32
    return %c0_i32, %c0_i32_0 : i32, i32
  }
  func.func @transform_2(%arg0: i32) -> (i32, i32) {
    %c0_i32 = arith.constant 0 : i32
    %c0_i32_0 = arith.constant 0 : i32
    %c0_i32_1 = arith.constant 0 : i32
    return %c0_i32, %c0_i32_0 : i32, i32
  }
  func.func @transform_3(%arg0: i32) -> (i32, i32, i32) {
    %c0_i32 = arith.constant 0 : i32
    %c0_i32_0 = arith.constant 0 : i32
    %c0_i32_1 = arith.constant 0 : i32
    return %arg0, %c0_i32, %c0_i32_0 : i32, i32, i32
  }
}

</mosaic_0001>

<llo_original>
// kernel: tpu_custom_call.1
$region0: #{tpu_custom_call.1}
  #allocation0 [shape = 'u32[]', space=smem, size = 0x4, offset = 0x4, fixed_abs, tag = 'smem constant byte address 0x4 - core index']
  #allocation1 [shape = 'u32[144,128]{1,0:T(1,128)}', space=vmem, size = 0x12000, scoped, tag = 'internal scratch']
  %s0 = inlined_call_operand.hbm [shape: f32[4,128,256], index: 0, kind: input, shape index: {}]
  %s1 = inlined_call_operand.vmem [shape: bf16[384,128], index: 1, kind: input, shape index: {}]
  %s2 = inlined_call_operand.vmem [shape: f32[384,1], index: 2, kind: input, shape index: {}]
  %s3 = inlined_call_operand.hbm [shape: f32[4,128,256], index: 3, kind: output, shape index: {}]
  %s4 = sld [smem:[#allocation0]]
  $region56: #{tpu_custom_call.1} parent=0
    _
  %s6 = ssub.s32 1, %s4
  %s7 = scalar_select 0, %s6, %s4
  $region1: #{tpu_custom_call.1} parent=0
    #allocation2 [shape = 'u8[524288]{0}', space=vmem, size = 0x80000, scoped, tag = 'input window, operand 0']
    #allocation3 [shape = 's32[2]{0}', space=sflag, size = 0x8, scoped, tag = 'scoped memory for tpu_custom_call.1']
    #allocation4 [shape = 's32[2]{0}', space=sflag, size = 0x8, scoped, tag = 'scoped memory for tpu_custom_call.1']
    #allocation5 [shape = 'u8[524288]{0}', space=vmem, size = 0x80000, scoped, tag = 'output window, operand 0']
    %8 = vsyncpa [#allocation3], 0
    %s9 = scalar_lea.sflag [#allocation3], 1
    %10 = vsyncpa %s9, 0
    %11 = vsyncpa [#allocation4], 0
    %s12 = scalar_lea.sflag [#allocation4], 1
    %13 = vsyncpa %s12, 0
    loop: start=0, step=1, limit=4
    $region2: #{tpu_custom_call.1} parent=1 // loop_pre_header
      _
    $region3: #{tpu_custom_call.1} parent=1 // loop_header
      %s15 = sphi 0, %s19
      %p16 = scmp.ge.s32.totalorder %s15, 4
      %s25 = sphi 0, %s27
      %s28 = sphi 0, %s25
      %s29 = sphi 0, %s28
      %s45 = sphi 0, %s29
      %s49 = sphi 0, %s49
      %s51 = sphi 0, %s49
      %s52 = sphi 0, %s51
      %s66 = sphi 0, %s52
      %s70 = sphi 0, %s70
      %s72 = sphi 0, %s70
      %s73 = sphi 0, %s72
      %s87 = sphi 0, %s73
      %s93 = sphi 0, %s95
      %s96 = sphi 0, %s93
      %s97 = sphi 0, %s96
      %s113 = sphi 0, %s97
    $region4: #{tpu_custom_call.1} parent=1 // loop_header_branch
      %18 = sbr.rel (%p16) target = $region8
    $region5: #{tpu_custom_call.1} parent=1 // loop_body
      %s20 = ssub.s32 %s15, 1
      %s21 = ssub.s32 %s15, 2
      %s22 = sadd.s32 %s15, 1
      %s23 = ssub.s32 %s15, %s22
      %p24 = scmp.eq.s32.totalorder %s23, 0
      %s26 = sadd.s32 %s25, 1
      %s27 = scalar_select %p24, %s25, %s26
      %p30 = pneg %p24
      %p31 = scmp.eq.s32.totalorder %s15, 1
      %p32 = por %p30, %p31
      %p33 = scmp.ne.s32.totalorder %s25, %s28
      %p34 = scmp.eq.s32.totalorder %s15, 0
      %p35 = por %p33, %p34
      %p36 = scmp.ne.s32.totalorder %s25, %s28
      %p37 = scmp.eq.s32.totalorder %s20, 1
      %p38 = por %p36, %p37
      %p39 = scmp.ne.s32.totalorder %s28, %s29
      %p40 = scmp.eq.s32.totalorder %s20, 0
      %p41 = por %p39, %p40
      %p42 = scmp.ne.s32.totalorder %s28, %s29
      %p43 = scmp.eq.s32.totalorder %s21, 1
      %p44 = por %p42, %p43
      %p46 = scmp.ne.s32.totalorder %s29, %s45
      %p47 = scmp.eq.s32.totalorder %s21, 0
      %p48 = por %p46, %p47
      %s50 = sadd.s32 %s49, 1
      %p53 = scmp.eq.s32.totalorder %s15, 1
      %p54 = scmp.ne.s32.totalorder %s49, %s51
      %p55 = scmp.eq.s32.totalorder %s15, 0
      %p56 = por %p54, %p55
      %p57 = scmp.ne.s32.totalorder %s49, %s51
      %p58 = scmp.eq.s32.totalorder %s20, 1
      %p59 = por %p57, %p58
      %p60 = scmp.ne.s32.totalorder %s51, %s52
      %p61 = scmp.eq.s32.totalorder %s20, 0
      %p62 = por %p60, %p61
      %p63 = scmp.ne.s32.totalorder %s51, %s52
      %p64 = scmp.eq.s32.totalorder %s21, 1
      %p65 = por %p63, %p64
      %p67 = scmp.ne.s32.totalorder %s52, %s66
      %p68 = scmp.eq.s32.totalorder %s21, 0
      %p69 = por %p67, %p68
      %s71 = sadd.s32 %s70, 1
      %p74 = scmp.eq.s32.totalorder %s15, 1
      %p75 = scmp.ne.s32.totalorder %s70, %s72
      %p76 = scmp.eq.s32.totalorder %s15, 0
      %p77 = por %p75, %p76
      %p78 = scmp.ne.s32.totalorder %s70, %s72
      %p79 = scmp.eq.s32.totalorder %s20, 1
      %p80 = por %p78, %p79
      %p81 = scmp.ne.s32.totalorder %s72, %s73
      %p82 = scmp.eq.s32.totalorder %s20, 0
      %p83 = por %p81, %p82
      %p84 = scmp.ne.s32.totalorder %s72, %s73
      %p85 = scmp.eq.s32.totalorder %s21, 1
      %p86 = por %p84, %p85
      %p88 = scmp.ne.s32.totalorder %s73, %s87
      %p89 = scmp.eq.s32.totalorder %s21, 0
      %p90 = por %p88, %p89
      %s91 = ssub.s32 %s15, %s22
      %p92 = scmp.eq.s32.totalorder %s91, 0
      %s94 = sadd.s32 %s93, 1
      %s95 = scalar_select %p92, %s93, %s94
      %p98 = pneg %p92
      %p99 = scmp.eq.s32.totalorder %s15, 1
      %p100 = por %p98, %p99
      %p101 = scmp.ne.s32.totalorder %s93, %s96
      %p102 = scmp.eq.s32.totalorder %s15, 0
      %p103 = por %p101, %p102
      %p104 = scmp.ne.s32.totalorder %s93, %s96
      %p105 = scmp.eq.s32.totalorder %s20, 1
      %p106 = por %p104, %p105
      %p107 = scmp.ne.s32.totalorder %s96, %s97
      %p108 = scmp.eq.s32.totalorder %s20, 0
      %p109 = por %p107, %p108
      %p110 = scmp.ne.s32.totalorder %s96, %s97
      %p111 = scmp.eq.s32.totalorder %s21, 1
      %p112 = por %p110, %p111
      %p114 = scmp.ne.s32.totalorder %s97, %s113
      %p115 = scmp.eq.s32.totalorder %s21, 0
      %p116 = por %p114, %p115
      %p117 = scmp.le.s32.totalorder 1, %s15
      %p118 = scmp.lt.s32.totalorder %s15, 3
      %p119 = pnand %p117, %p118
      %p120 = pneg %p119
      // Predicated region
      $region9: #{tpu_custom_call.1} parent=5 // pred_check
        _
      $region10: #{tpu_custom_call.1} parent=5 // pred_check_branch
        %122 = sbr.rel (%p119) target = $region12
      $region11: #{tpu_custom_call.1} parent=5 // pred_region
        %s123 = ssub.s32 %s15, 1
        // Predicated region
        $region13: #{tpu_custom_call.1} parent=11 // pred_check
          %p124 = pneg %p62
        $region14: #{tpu_custom_call.1} parent=11 // pred_check_branch
          %126 = sbr.rel (%p124) target = $region16
        $region15: #{tpu_custom_call.1} parent=11 // pred_region
          _
        $region16: #{tpu_custom_call.1} parent=11 // pred_fallthru
          _
        // Predicated region
        $region17: #{tpu_custom_call.1} parent=11 // pred_check
          %p127 = pneg %p83
        $region18: #{tpu_custom_call.1} parent=11 // pred_check_branch
          %129 = sbr.rel (%p127) target = $region20
        $region19: #{tpu_custom_call.1} parent=11 // pred_region
          _
        $region20: #{tpu_custom_call.1} parent=11 // pred_fallthru
          _
      $region12: #{tpu_custom_call.1} parent=5 // pred_fallthru
        _
      %p130 = scmp.lt.s32.totalorder %s15, 2
      // Predicated region
      $region21: #{tpu_custom_call.1} parent=5 // pred_check
        %p131 = pneg %p130
      $region22: #{tpu_custom_call.1} parent=5 // pred_check_branch
        %133 = sbr.rel (%p131) target = $region24
      $region23: #{tpu_custom_call.1} parent=5 // pred_region
        // Predicated region
        $region25: #{tpu_custom_call.1} parent=23 // pred_check
          %p134 = pneg %p35
        $region26: #{tpu_custom_call.1} parent=23 // pred_check_branch
          %136 = sbr.rel (%p134) target = $region28
        $region27: #{tpu_custom_call.1} parent=23 // pred_region
          %s137 = sand.u32 %s25, 1
          %s138 = scalar_lea.sflag [#allocation3], %s137
          %s139 = sand.u32 %s25, 1
          %s140 = smul.addr %s139, 512
          %s141 = scalar_lea.vmem [#allocation2], %s140
          %s142 = smul.u32 2, %s15
          %s144 = ssub.s32 8192, 8192
          %145 = vsyncadd %s138, %s144
          %s146 = smul.addr %s142, 32
          %s147 = smul.addr %s146, 128
          %s148 = scalar_lea.hbm %s0, %s147
          %s149 = sshll.u32 %s141, 4
          %s150 = int_to_ptr.vmem [resolvable:$true] %s149
          %155 = dma.hbm_to_vmem [thread:$0]  %s148, 8192, %s150, %s138, 256, 256, 16
        $region28: #{tpu_custom_call.1} parent=23 // pred_fallthru
          _
      $region24: #{tpu_custom_call.1} parent=5 // pred_fallthru
        _
      %p156 = scmp.le.s32.totalorder 1, %s15
      %p157 = scmp.lt.s32.totalorder %s15, 3
      %p158 = pnand %p156, %p157
      %p159 = pneg %p158
      // Predicated region
      $region29: #{tpu_custom_call.1} parent=5 // pred_check
        _
      $region30: #{tpu_custom_call.1} parent=5 // pred_check_branch
        %161 = sbr.rel (%p158) target = $region32
      $region31: #{tpu_custom_call.1} parent=5 // pred_region
        %s162 = ssub.s32 %s15, 1
        %s163 = sand.u32 %s28, 1
        %s164 = scalar_lea.sflag [#allocation3], %s163
        %s165 = sand.u32 %s28, 1
        %s166 = smul.addr %s165, 512
        %s167 = scalar_lea.vmem [#allocation2], %s166
        // Predicated region
        $region33: #{tpu_custom_call.1} parent=31 // pred_check
          %p168 = pneg %p41
        $region34: #{tpu_custom_call.1} parent=31 // pred_check_branch
          %170 = sbr.rel (%p168) target = $region36
        $region35: #{tpu_custom_call.1} parent=31 // pred_region
          %171 = dma.done %s164, 8192
        $region36: #{tpu_custom_call.1} parent=31 // pred_fallthru
          _
        %s172 = sand.u32 %s28, 1
        %s173 = scalar_lea.sflag [#allocation3], %s172
        %s174 = sand.u32 %s28, 1
        %s175 = smul.addr %s174, 512
        %s176 = scalar_lea.vmem [#allocation2], %s175
        %p177 = pneg %p41
        %p178 = pneg %p38
        %p179 = pneg %p62
        %p180 = pneg %p59
        %p181 = pneg %p83
        %p182 = pneg %p80
        %p183 = pneg %p109
        %p184 = pneg %p106
        %s185 = sand.u32 %s96, 1
        %s186 = scalar_lea.sflag [#allocation4], %s185
        %s187 = sand.u32 %s96, 1
        %s188 = smul.addr %s187, 512
        %s189 = scalar_lea.vmem [#allocation5], %s188
        %s190 = smul.u32 2, %s20
        %s191 = smul.u32 2, %s20
        %v193 = vld [vmem:[%s1] sm:$0xf]
        %v194 = vld [vmem:[%s1 + $0x4] sm:$0xf]
        %v195 = vld [vmem:[%s1 + $0x8] sm:$0xf]
        %v196 = vld [vmem:[%s1 + $0xc] sm:$0xf]
        %v197 = vld [vmem:[%s1 + $0x10] sm:$0xf]
        %v198 = vld [vmem:[%s1 + $0x14] sm:$0xf]
        %v199 = vld [vmem:[%s1 + $0x18] sm:$0xf]
        %v200 = vld [vmem:[%s1 + $0x1c] sm:$0xf]
        %v201 = vld [vmem:[%s1 + $0x20] sm:$0xf]
        %v202 = vld [vmem:[%s1 + $0x24] sm:$0xf]
        %v203 = vld [vmem:[%s1 + $0x28] sm:$0xf]
        %v204 = vld [vmem:[%s1 + $0x2c] sm:$0xf]
        %v205 = vld [vmem:[%s1 + $0x30] sm:$0xf]
        %v206 = vld [vmem:[%s1 + $0x34] sm:$0xf]
        %v207 = vld [vmem:[%s1 + $0x38] sm:$0xf]
        %v208 = vld [vmem:[%s1 + $0x3c] sm:$0xf]
        %v209 = vld [vmem:[%s1 + $0x40] sm:$0xf]
        %v210 = vld [vmem:[%s1 + $0x44] sm:$0xf]
        %v211 = vld [vmem:[%s1 + $0x48] sm:$0xf]
        %v212 = vld [vmem:[%s1 + $0x4c] sm:$0xf]
        %v213 = vld [vmem:[%s1 + $0x50] sm:$0xf]
        %v214 = vld [vmem:[%s1 + $0x54] sm:$0xf]
        %v215 = vld [vmem:[%s1 + $0x58] sm:$0xf]
        %v216 = vld [vmem:[%s1 + $0x5c] sm:$0xf]
        %v217 = vld [vmem:[%s1 + $0x60] sm:$0xf]
        %v218 = vld [vmem:[%s1 + $0x64] sm:$0xf]
        %v219 = vld [vmem:[%s1 + $0x68] sm:$0xf]
        %v220 = vld [vmem:[%s1 + $0x6c] sm:$0xf]
        %v221 = vld [vmem:[%s1 + $0x70] sm:$0xf]
        %v222 = vld [vmem:[%s1 + $0x74] sm:$0xf]
        %v223 = vld [vmem:[%s1 + $0x78] sm:$0xf]
        %v224 = vld [vmem:[%s1 + $0x7c] sm:$0xf]
        %v225 = vld [vmem:[%s1 + $0x80] sm:$0xf]
        %v226 = vld [vmem:[%s1 + $0x84] sm:$0xf]
        %v227 = vld [vmem:[%s1 + $0x88] sm:$0xf]
        %v228 = vld [vmem:[%s1 + $0x8c] sm:$0xf]
        %v229 = vld [vmem:[%s1 + $0x90] sm:$0xf]
        %v230 = vld [vmem:[%s1 + $0x94] sm:$0xf]
        %v231 = vld [vmem:[%s1 + $0x98] sm:$0xf]
        %v232 = vld [vmem:[%s1 + $0x9c] sm:$0xf]
        %v233 = vld [vmem:[%s1 + $0xa0] sm:$0xf]
        %v234 = vld [vmem:[%s1 + $0xa4] sm:$0xf]
        %v235 = vld [vmem:[%s1 + $0xa8] sm:$0xf]
        %v236 = vld [vmem:[%s1 + $0xac] sm:$0xf]
        %v237 = vld [vmem:[%s1 + $0xb0] sm:$0xf]
        %v238 = vld [vmem:[%s1 + $0xb4] sm:$0xf]
        %v239 = vld [vmem:[%s1 + $0xb8] sm:$0xf]
        %v240 = vld [vmem:[%s1 + $0xbc] sm:$0xf]
        %v241 = vld [vmem:[%s2] sm:$0xff]
        %v242 = vld [vmem:[%s2 + $0x8] sm:$0xff]
        %v243 = vld [vmem:[%s2 + $0x10] sm:$0xff]
        %v244 = vld [vmem:[%s2 + $0x18] sm:$0xff]
        %v245 = vld [vmem:[%s2 + $0x20] sm:$0xff]
        %v246 = vld [vmem:[%s2 + $0x28] sm:$0xff]
        %v247 = vld [vmem:[%s2 + $0x30] sm:$0xff]
        %v248 = vld [vmem:[%s2 + $0x38] sm:$0xff]
        %v249 = vld [vmem:[%s2 + $0x40] sm:$0xff]
        %v250 = vld [vmem:[%s2 + $0x48] sm:$0xff]
        %v251 = vld [vmem:[%s2 + $0x50] sm:$0xff]
        %v252 = vld [vmem:[%s2 + $0x58] sm:$0xff]
        %v253 = vld [vmem:[%s2 + $0x60] sm:$0xff]
        %v254 = vld [vmem:[%s2 + $0x68] sm:$0xff]
        %v255 = vld [vmem:[%s2 + $0x70] sm:$0xff]
        %v256 = vld [vmem:[%s2 + $0x78] sm:$0xff]
        %v257 = vld [vmem:[%s2 + $0x80] sm:$0xff]
        %v258 = vld [vmem:[%s2 + $0x88] sm:$0xff]
        %v259 = vld [vmem:[%s2 + $0x90] sm:$0xff]
        %v260 = vld [vmem:[%s2 + $0x98] sm:$0xff]
        %v261 = vld [vmem:[%s2 + $0xa0] sm:$0xff]
        %v262 = vld [vmem:[%s2 + $0xa8] sm:$0xff]
        %v263 = vld [vmem:[%s2 + $0xb0] sm:$0xff]
        %v264 = vld [vmem:[%s2 + $0xb8] sm:$0xff]
        %v265 = vld [vmem:[%s2 + $0xc0] sm:$0xff]
        %v266 = vld [vmem:[%s2 + $0xc8] sm:$0xff]
        %v267 = vld [vmem:[%s2 + $0xd0] sm:$0xff]
        %v268 = vld [vmem:[%s2 + $0xd8] sm:$0xff]
        %v269 = vld [vmem:[%s2 + $0xe0] sm:$0xff]
        %v270 = vld [vmem:[%s2 + $0xe8] sm:$0xff]
        %v271 = vld [vmem:[%s2 + $0xf0] sm:$0xff]
        %v272 = vld [vmem:[%s2 + $0xf8] sm:$0xff]
        %v273 = vld [vmem:[%s2 + $0x100] sm:$0xff]
        %v274 = vld [vmem:[%s2 + $0x108] sm:$0xff]
        %v275 = vld [vmem:[%s2 + $0x110] sm:$0xff]
        %v276 = vld [vmem:[%s2 + $0x118] sm:$0xff]
        %v277 = vld [vmem:[%s2 + $0x120] sm:$0xff]
        %v278 = vld [vmem:[%s2 + $0x128] sm:$0xff]
        %v279 = vld [vmem:[%s2 + $0x130] sm:$0xff]
        %v280 = vld [vmem:[%s2 + $0x138] sm:$0xff]
        %v281 = vld [vmem:[%s2 + $0x140] sm:$0xff]
        %v282 = vld [vmem:[%s2 + $0x148] sm:$0xff]
        %v283 = vld [vmem:[%s2 + $0x150] sm:$0xff]
        %v284 = vld [vmem:[%s2 + $0x158] sm:$0xff]
        %v285 = vld [vmem:[%s2 + $0x160] sm:$0xff]
        %v286 = vld [vmem:[%s2 + $0x168] sm:$0xff]
        %v287 = vld [vmem:[%s2 + $0x170] sm:$0xff]
        %v288 = vld [vmem:[%s2 + $0x178] sm:$0xff]
        %290 = vset.pattern.permute.xlu0 0
        %291 = vperm.xlu0 %290, %v241
        %v292 = vpop.permute.xlu0 %291
        %295 = vset.pattern.permute.xlu0 0
        %296 = vperm.xlu0 %295, %v242
        %v297 = vpop.permute.xlu0 %296
        %300 = vset.pattern.permute.xlu0 0
        %301 = vperm.xlu0 %300, %v243
        %v302 = vpop.permute.xlu0 %301
        %305 = vset.pattern.permute.xlu0 0
        %306 = vperm.xlu0 %305, %v244
        %v307 = vpop.permute.xlu0 %306
        %310 = vset.pattern.permute.xlu0 0
        %311 = vperm.xlu0 %310, %v245
        %v312 = vpop.permute.xlu0 %311
        %315 = vset.pattern.permute.xlu0 0
        %316 = vperm.xlu0 %315, %v246
        %v317 = vpop.permute.xlu0 %316
        %320 = vset.pattern.permute.xlu0 0
        %321 = vperm.xlu0 %320, %v247
        %v322 = vpop.permute.xlu0 %321
        %325 = vset.pattern.permute.xlu0 0
        %326 = vperm.xlu0 %325, %v248
        %v327 = vpop.permute.xlu0 %326
        %330 = vset.pattern.permute.xlu0 0
        %331 = vperm.xlu0 %330, %v249
        %v332 = vpop.permute.xlu0 %331
        %335 = vset.pattern.permute.xlu0 0
        %336 = vperm.xlu0 %335, %v250
        %v337 = vpop.permute.xlu0 %336
        %340 = vset.pattern.permute.xlu0 0
        %341 = vperm.xlu0 %340, %v251
        %v342 = vpop.permute.xlu0 %341
        %345 = vset.pattern.permute.xlu0 0
        %346 = vperm.xlu0 %345, %v252
        %v347 = vpop.permute.xlu0 %346
        %350 = vset.pattern.permute.xlu0 0
        %351 = vperm.xlu0 %350, %v253
        %v352 = vpop.permute.xlu0 %351
        %355 = vset.pattern.permute.xlu0 0
        %356 = vperm.xlu0 %355, %v254
        %v357 = vpop.permute.xlu0 %356
        %360 = vset.pattern.permute.xlu0 0
        %361 = vperm.xlu0 %360, %v255
        %v362 = vpop.permute.xlu0 %361
        %365 = vset.pattern.permute.xlu0 0
        %366 = vperm.xlu0 %365, %v256
        %v367 = vpop.permute.xlu0 %366
        %370 = vset.pattern.permute.xlu0 0
        %371 = vperm.xlu0 %370, %v257
        %v372 = vpop.permute.xlu0 %371
        %375 = vset.pattern.permute.xlu0 0
        %376 = vperm.xlu0 %375, %v258
        %v377 = vpop.permute.xlu0 %376
        %380 = vset.pattern.permute.xlu0 0
        %381 = vperm.xlu0 %380, %v259
        %v382 = vpop.permute.xlu0 %381
        %385 = vset.pattern.permute.xlu0 0
        %386 = vperm.xlu0 %385, %v260
        %v387 = vpop.permute.xlu0 %386
        %390 = vset.pattern.permute.xlu0 0
        %391 = vperm.xlu0 %390, %v261
        %v392 = vpop.permute.xlu0 %391
        %395 = vset.pattern.permute.xlu0 0
        %396 = vperm.xlu0 %395, %v262
        %v397 = vpop.permute.xlu0 %396
        %400 = vset.pattern.permute.xlu0 0
        %401 = vperm.xlu0 %400, %v263
        %v402 = vpop.permute.xlu0 %401
        %405 = vset.pattern.permute.xlu0 0
        %406 = vperm.xlu0 %405, %v264
        %v407 = vpop.permute.xlu0 %406
        %410 = vset.pattern.permute.xlu0 0
        %411 = vperm.xlu0 %410, %v265
        %v412 = vpop.permute.xlu0 %411
        %415 = vset.pattern.permute.xlu0 0
        %416 = vperm.xlu0 %415, %v266
        %v417 = vpop.permute.xlu0 %416
        %420 = vset.pattern.permute.xlu0 0
        %421 = vperm.xlu0 %420, %v267
        %v422 = vpop.permute.xlu0 %421
        %425 = vset.pattern.permute.xlu0 0
        %426 = vperm.xlu0 %425, %v268
        %v427 = vpop.permute.xlu0 %426
        %430 = vset.pattern.permute.xlu0 0
        %431 = vperm.xlu0 %430, %v269
        %v432 = vpop.permute.xlu0 %431
        %435 = vset.pattern.permute.xlu0 0
        %436 = vperm.xlu0 %435, %v270
        %v437 = vpop.permute.xlu0 %436
        %440 = vset.pattern.permute.xlu0 0
        %441 = vperm.xlu0 %440, %v271
        %v442 = vpop.permute.xlu0 %441
        %445 = vset.pattern.permute.xlu0 0
        %446 = vperm.xlu0 %445, %v272
        %v447 = vpop.permute.xlu0 %446
        %450 = vset.pattern.permute.xlu0 0
        %451 = vperm.xlu0 %450, %v273
        %v452 = vpop.permute.xlu0 %451
        %455 = vset.pattern.permute.xlu0 0
        %456 = vperm.xlu0 %455, %v274
        %v457 = vpop.permute.xlu0 %456
        %460 = vset.pattern.permute.xlu0 0
        %461 = vperm.xlu0 %460, %v275
        %v462 = vpop.permute.xlu0 %461
        %465 = vset.pattern.permute.xlu0 0
        %466 = vperm.xlu0 %465, %v276
        %v467 = vpop.permute.xlu0 %466
        %470 = vset.pattern.permute.xlu0 0
        %471 = vperm.xlu0 %470, %v277
        %v472 = vpop.permute.xlu0 %471
        %475 = vset.pattern.permute.xlu0 0
        %476 = vperm.xlu0 %475, %v278
        %v477 = vpop.permute.xlu0 %476
        %480 = vset.pattern.permute.xlu0 0
        %481 = vperm.xlu0 %480, %v279
        %v482 = vpop.permute.xlu0 %481
        %485 = vset.pattern.permute.xlu0 0
        %486 = vperm.xlu0 %485, %v280
        %v487 = vpop.permute.xlu0 %486
        %490 = vset.pattern.permute.xlu0 0
        %491 = vperm.xlu0 %490, %v281
        %v492 = vpop.permute.xlu0 %491
        %495 = vset.pattern.permute.xlu0 0
        %496 = vperm.xlu0 %495, %v282
        %v497 = vpop.permute.xlu0 %496
        %500 = vset.pattern.permute.xlu0 0
        %501 = vperm.xlu0 %500, %v283
        %v502 = vpop.permute.xlu0 %501
        %505 = vset.pattern.permute.xlu0 0
        %506 = vperm.xlu0 %505, %v284
        %v507 = vpop.permute.xlu0 %506
        %510 = vset.pattern.permute.xlu0 0
        %511 = vperm.xlu0 %510, %v285
        %v512 = vpop.permute.xlu0 %511
        %515 = vset.pattern.permute.xlu0 0
        %516 = vperm.xlu0 %515, %v286
        %v517 = vpop.permute.xlu0 %516
        %520 = vset.pattern.permute.xlu0 0
        %521 = vperm.xlu0 %520, %v287
        %v522 = vpop.permute.xlu0 %521
        %525 = vset.pattern.permute.xlu0 0
        %526 = vperm.xlu0 %525, %v288
        %v527 = vpop.permute.xlu0 %526
        loop: start=0, step=1, limit=2
        $region37: #{tpu_custom_call.1} parent=31 // loop_pre_header
          _
        $region38: #{tpu_custom_call.1} parent=31 // loop_header
          %s530 = sphi 0, %s534
          %p531 = scmp.ge.s32.totalorder %s530, 2
        $region39: #{tpu_custom_call.1} parent=31 // loop_header_branch
          %533 = sbr.rel (%p531) target = $region43
        $region40: #{tpu_custom_call.1} parent=31 // loop_body
          %s535 = smul.u32 %s530, 32
          %s536 = smul.addr %s535, 8
          %s537 = scalar_lea.vmem %s167, %s536 [#allocation2]
          %v538 = vld [vmem:[%s537] sm:$0xff]
          %v539 = vld [vmem:[%s537 + $0x8] sm:$0xff]
          %v540 = vld [vmem:[%s537 + $0x10] sm:$0xff]
          %v541 = vld [vmem:[%s537 + $0x18] sm:$0xff]
          %v542 = vld [vmem:[%s537 + $0x20] sm:$0xff]
          %v543 = vld [vmem:[%s537 + $0x28] sm:$0xff]
          %v544 = vld [vmem:[%s537 + $0x30] sm:$0xff]
          %v545 = vld [vmem:[%s537 + $0x38] sm:$0xff]
          %v546 = vld [vmem:[%s537 + $0x40] sm:$0xff]
          %v547 = vld [vmem:[%s537 + $0x48] sm:$0xff]
          %v548 = vld [vmem:[%s537 + $0x50] sm:$0xff]
          %v549 = vld [vmem:[%s537 + $0x58] sm:$0xff]
          %v550 = vld [vmem:[%s537 + $0x60] sm:$0xff]
          %v551 = vld [vmem:[%s537 + $0x68] sm:$0xff]
          %v552 = vld [vmem:[%s537 + $0x70] sm:$0xff]
          %v553 = vld [vmem:[%s537 + $0x78] sm:$0xff]
          %v554 = vld [vmem:[%s537 + $0x80] sm:$0xff]
          %v555 = vld [vmem:[%s537 + $0x88] sm:$0xff]
          %v556 = vld [vmem:[%s537 + $0x90] sm:$0xff]
          %v557 = vld [vmem:[%s537 + $0x98] sm:$0xff]
          %v558 = vld [vmem:[%s537 + $0xa0] sm:$0xff]
          %v559 = vld [vmem:[%s537 + $0xa8] sm:$0xff]
          %v560 = vld [vmem:[%s537 + $0xb0] sm:$0xff]
          %v561 = vld [vmem:[%s537 + $0xb8] sm:$0xff]
          %v562 = vld [vmem:[%s537 + $0xc0] sm:$0xff]
          %v563 = vld [vmem:[%s537 + $0xc8] sm:$0xff]
          %v564 = vld [vmem:[%s537 + $0xd0] sm:$0xff]
          %v565 = vld [vmem:[%s537 + $0xd8] sm:$0xff]
          %v566 = vld [vmem:[%s537 + $0xe0] sm:$0xff]
          %v567 = vld [vmem:[%s537 + $0xe8] sm:$0xff]
          %v568 = vld [vmem:[%s537 + $0xf0] sm:$0xff]
          %v569 = vld [vmem:[%s537 + $0xf8] sm:$0xff]
          %v570 = vpack.c.bf16 %v540, %v538
          %v571 = vpack.c.bf16 %v541, %v539
          %v572 = vpack.c.bf16 %v544, %v542
          %v573 = vpack.c.bf16 %v545, %v543
          %v574 = vpack.c.bf16 %v548, %v546
          %v575 = vpack.c.bf16 %v549, %v547
          %v576 = vpack.c.bf16 %v552, %v550
          %v577 = vpack.c.bf16 %v553, %v551
          %v578 = vpack.c.bf16 %v556, %v554
          %v579 = vpack.c.bf16 %v557, %v555
          %v580 = vpack.c.bf16 %v560, %v558
          %v581 = vpack.c.bf16 %v561, %v559
          %v582 = vpack.c.bf16 %v564, %v562
          %v583 = vpack.c.bf16 %v565, %v563
          %v584 = vpack.c.bf16 %v568, %v566
          %v585 = vpack.c.bf16 %v569, %v567
          %v634 = vunpack.c.l.b16 %v193
          %v635 = vunpack.c.l.b16 %v194
          %v636 = vunpack.c.l.b16 %v195
          %v637 = vunpack.c.l.b16 %v196
          %v638 = vunpack.c.l.b16 %v197
          %v639 = vunpack.c.l.b16 %v198
          %v640 = vunpack.c.l.b16 %v199
          %v641 = vunpack.c.l.b16 %v200
          %v642 = vunpack.c.l.b16 %v201
          %v643 = vunpack.c.l.b16 %v202
          %v644 = vunpack.c.l.b16 %v203
          %v645 = vunpack.c.l.b16 %v204
          %v646 = vunpack.c.l.b16 %v205
          %v647 = vunpack.c.l.b16 %v206
          %v648 = vunpack.c.l.b16 %v207
          %v649 = vunpack.c.l.b16 %v208
          %v650 = vunpack.c.l.b16 %v209
          %v651 = vunpack.c.l.b16 %v210
          %v652 = vunpack.c.l.b16 %v211
          %v653 = vunpack.c.l.b16 %v212
          %v654 = vunpack.c.l.b16 %v213
          %v655 = vunpack.c.l.b16 %v214
          %v656 = vunpack.c.l.b16 %v215
          %v657 = vunpack.c.l.b16 %v216
          %v658 = vunpack.c.l.b16 %v217
          %v659 = vunpack.c.l.b16 %v218
          %v660 = vunpack.c.l.b16 %v219
          %v661 = vunpack.c.l.b16 %v220
          %v662 = vunpack.c.l.b16 %v221
          %v663 = vunpack.c.l.b16 %v222
          %v664 = vunpack.c.l.b16 %v223
          %v665 = vunpack.c.l.b16 %v224
          %v666 = vunpack.c.l.b16 %v225
          %v667 = vunpack.c.l.b16 %v226
          %v668 = vunpack.c.l.b16 %v227
          %v669 = vunpack.c.l.b16 %v228
          %v670 = vunpack.c.l.b16 %v229
          %v671 = vunpack.c.l.b16 %v230
          %v672 = vunpack.c.l.b16 %v231
          %v673 = vunpack.c.l.b16 %v232
          %v674 = vunpack.c.l.b16 %v233
          %v675 = vunpack.c.l.b16 %v234
          %v676 = vunpack.c.l.b16 %v235
          %v677 = vunpack.c.l.b16 %v236
          %v678 = vunpack.c.l.b16 %v237
          %v679 = vunpack.c.l.b16 %v238
          %v680 = vunpack.c.l.b16 %v239
          %v681 = vunpack.c.l.b16 %v240
          %v682 = vpack.c.b16 %v635, %v634
          %v683 = vpack.c.b16 %v637, %v636
          %v684 = vpack.c.b16 %v639, %v638
          %v685 = vpack.c.b16 %v641, %v640
          %v686 = vpack.c.b16 %v643, %v642
          %v687 = vpack.c.b16 %v645, %v644
          %v688 = vpack.c.b16 %v647, %v646
          %v689 = vpack.c.b16 %v649, %v648
          %v690 = vpack.c.b16 %v651, %v650
          %v691 = vpack.c.b16 %v653, %v652
          %v692 = vpack.c.b16 %v655, %v654
          %v693 = vpack.c.b16 %v657, %v656
          %v694 = vpack.c.b16 %v659, %v658
          %v695 = vpack.c.b16 %v661, %v660
          %v696 = vpack.c.b16 %v663, %v662
          %v697 = vpack.c.b16 %v665, %v664
          %v698 = vpack.c.b16 %v667, %v666
          %v699 = vpack.c.b16 %v669, %v668
          %v700 = vpack.c.b16 %v671, %v670
          %v701 = vpack.c.b16 %v673, %v672
          %v702 = vpack.c.b16 %v675, %v674
          %v703 = vpack.c.b16 %v677, %v676
          %v704 = vpack.c.b16 %v679, %v678
          %v705 = vpack.c.b16 %v681, %v680
          %730 = vmatprep.subr.bf16.mxu0 %v585
          %731 = vmatpush1.bf16.msra.mxu0 %v584
          %732 = vmatprep.subr.bf16.mxu0 %v583
          %733 = vmatpush1.bf16.msra.mxu0 %v582
          %734 = vmatprep.subr.bf16.mxu0 %v581
          %735 = vmatpush1.bf16.msra.mxu0 %v580
          %736 = vmatprep.subr.bf16.mxu0 %v579
          %737 = vmatpush1.bf16.msra.mxu0 %v578
          %738 = vmatprep.subr.bf16.mxu0 %v577
          %739 = vmatpush1.bf16.msra.mxu0 %v576
          %740 = vmatprep.subr.bf16.mxu0 %v575
          %741 = vmatpush1.bf16.msra.mxu0 %v574
          %742 = vmatprep.subr.bf16.mxu0 %v573
          %743 = vmatpush1.bf16.msra.mxu0 %v572
          %744 = vmatprep.subr.bf16.mxu0 %v571
          %745 = vmatpush1.bf16.msra.mxu0 %v570
          %746 = vmatprep.subr.bf16.mxu0 0
          %747 = vmatpush2.bf16.msra.mxu0 0
          %748 = vmatprep.subr.bf16.mxu0 0
          %749 = vmatpush2.bf16.msra.mxu0 0
          %750 = vmatprep.subr.bf16.mxu0 0
          %751 = vmatpush2.bf16.msra.mxu0 0
          %752 = vmatprep.subr.bf16.mxu0 0
          %753 = vmatpush2.bf16.msra.mxu0 0
          %754 = vmatprep.subr.bf16.mxu0 0
          %755 = vmatpush2.bf16.msra.mxu0 0
          %756 = vmatprep.subr.bf16.mxu0 0
          %757 = vmatpush2.bf16.msra.mxu0 0
          %758 = vmatprep.subr.bf16.mxu0 0
          %759 = vmatpush2.bf16.msra.mxu0 0
          %760 = vmatprep.subr.bf16.mxu0 0
          %761 = vmatpush2.bf16.msra.mxu0 0
          %762 = vmatprep.mubr.bf16.mxu0 0
          %763 = vmatmul.mubr.bf16.gmra.mxu0 %v682
          %v764 = vpop.f32.mrf.mxu0
          %v765 = vadd.f32 %v292, %v764
          %v766 = vpop.f32.mrf.mxu0
          %v767 = vadd.f32 %v292, %v766
          %v768 = vpop.f32.mrf.mxu0
          %v769 = vadd.f32 %v297, %v768
          %v770 = vpop.f32.mrf.mxu0
          %v771 = vadd.f32 %v297, %v770
          %772 = vmatprep.mubr.bf16.mxu0 0
          %773 = vmatmul.mubr.bf16.gmra.mxu0 %v683
          %v774 = vpop.f32.mrf.mxu0
          %v775 = vadd.f32 %v302, %v774
          %v776 = vpop.f32.mrf.mxu0
          %v777 = vadd.f32 %v302, %v776
          %v778 = vpop.f32.mrf.mxu0
          %v779 = vadd.f32 %v307, %v778
          %v780 = vpop.f32.mrf.mxu0
          %v781 = vadd.f32 %v307, %v780
          %782 = vmatprep.mubr.bf16.mxu0 0
          %783 = vmatmul.mubr.bf16.gmra.mxu0 %v684
          %v784 = vpop.f32.mrf.mxu0
          %v785 = vadd.f32 %v312, %v784
          %v786 = vpop.f32.mrf.mxu0
          %v787 = vadd.f32 %v312, %v786
          %v788 = vpop.f32.mrf.mxu0
          %v789 = vadd.f32 %v317, %v788
          %v790 = vpop.f32.mrf.mxu0
          %v791 = vadd.f32 %v317, %v790
          %792 = vmatprep.mubr.bf16.mxu0 0
          %793 = vmatmul.mubr.bf16.gmra.mxu0 %v685
          %v794 = vpop.f32.mrf.mxu0
          %v795 = vadd.f32 %v322, %v794
          %v796 = vpop.f32.mrf.mxu0
          %v797 = vadd.f32 %v322, %v796
          %v798 = vpop.f32.mrf.mxu0
          %v799 = vadd.f32 %v327, %v798
          %v800 = vpop.f32.mrf.mxu0
          %v801 = vadd.f32 %v327, %v800
          %802 = vmatprep.mubr.bf16.mxu0 0
          %803 = vmatmul.mubr.bf16.gmra.mxu0 %v686
          %v804 = vpop.f32.mrf.mxu0
          %v805 = vadd.f32 %v332, %v804
          %v806 = vpop.f32.mrf.mxu0
          %v807 = vadd.f32 %v332, %v806
          %v808 = vpop.f32.mrf.mxu0
          %v809 = vadd.f32 %v337, %v808
          %v810 = vpop.f32.mrf.mxu0
          %v811 = vadd.f32 %v337, %v810
          %812 = vmatprep.mubr.bf16.mxu0 0
          %813 = vmatmul.mubr.bf16.gmra.mxu0 %v687
          %v814 = vpop.f32.mrf.mxu0
          %v815 = vadd.f32 %v342, %v814
          %v816 = vpop.f32.mrf.mxu0
          %v817 = vadd.f32 %v342, %v816
          %v818 = vpop.f32.mrf.mxu0
          %v819 = vadd.f32 %v347, %v818
          %v820 = vpop.f32.mrf.mxu0
          %v821 = vadd.f32 %v347, %v820
          %822 = vmatprep.mubr.bf16.mxu0 0
          %823 = vmatmul.mubr.bf16.gmra.mxu0 %v688
          %v824 = vpop.f32.mrf.mxu0
          %v825 = vadd.f32 %v352, %v824
          %v826 = vpop.f32.mrf.mxu0
          %v827 = vadd.f32 %v352, %v826
          %v828 = vpop.f32.mrf.mxu0
          %v829 = vadd.f32 %v357, %v828
          %v830 = vpop.f32.mrf.mxu0
          %v831 = vadd.f32 %v357, %v830
          %832 = vmatprep.mubr.bf16.mxu0 0
          %833 = vmatmul.mubr.bf16.gmra.mxu0 %v689
          %v834 = vpop.f32.mrf.mxu0
          %v835 = vadd.f32 %v362, %v834
          %v836 = vpop.f32.mrf.mxu0
          %v837 = vadd.f32 %v362, %v836
          %v838 = vpop.f32.mrf.mxu0
          %v839 = vadd.f32 %v367, %v838
          %v840 = vpop.f32.mrf.mxu0
          %v841 = vadd.f32 %v367, %v840
          %842 = vmatprep.mubr.bf16.mxu0 0
          %843 = vmatmul.mubr.bf16.gmra.mxu0 %v690
          %v844 = vpop.f32.mrf.mxu0
          %v845 = vadd.f32 %v372, %v844
          %v846 = vpop.f32.mrf.mxu0
          %v847 = vadd.f32 %v372, %v846
          %v848 = vpop.f32.mrf.mxu0
          %v849 = vadd.f32 %v377, %v848
          %v850 = vpop.f32.mrf.mxu0
          %v851 = vadd.f32 %v377, %v850
          %852 = vmatprep.mubr.bf16.mxu0 0
          %853 = vmatmul.mubr.bf16.gmra.mxu0 %v691
          %v854 = vpop.f32.mrf.mxu0
          %v855 = vadd.f32 %v382, %v854
          %v856 = vpop.f32.mrf.mxu0
          %v857 = vadd.f32 %v382, %v856
          %v858 = vpop.f32.mrf.mxu0
          %v859 = vadd.f32 %v387, %v858
          %v860 = vpop.f32.mrf.mxu0
          %v861 = vadd.f32 %v387, %v860
          %862 = vmatprep.mubr.bf16.mxu0 0
          %863 = vmatmul.mubr.bf16.gmra.mxu0 %v692
          %v864 = vpop.f32.mrf.mxu0
          %v865 = vadd.f32 %v392, %v864
          %v866 = vpop.f32.mrf.mxu0
          %v867 = vadd.f32 %v392, %v866
          %v868 = vpop.f32.mrf.mxu0
          %v869 = vadd.f32 %v397, %v868
          %v870 = vpop.f32.mrf.mxu0
          %v871 = vadd.f32 %v397, %v870
          %872 = vmatprep.mubr.bf16.mxu0 0
          %873 = vmatmul.mubr.bf16.gmra.mxu0 %v693
          %v874 = vpop.f32.mrf.mxu0
          %v875 = vadd.f32 %v402, %v874
          %v876 = vpop.f32.mrf.mxu0
          %v877 = vadd.f32 %v402, %v876
          %v878 = vpop.f32.mrf.mxu0
          %v879 = vadd.f32 %v407, %v878
          %v880 = vpop.f32.mrf.mxu0
          %v881 = vadd.f32 %v407, %v880
          %882 = vmatprep.mubr.bf16.mxu0 0
          %883 = vmatmul.mubr.bf16.gmra.mxu0 %v694
          %v884 = vpop.f32.mrf.mxu0
          %v885 = vadd.f32 %v412, %v884
          %v886 = vpop.f32.mrf.mxu0
          %v887 = vadd.f32 %v412, %v886
          %v888 = vpop.f32.mrf.mxu0
          %v889 = vadd.f32 %v417, %v888
          %v890 = vpop.f32.mrf.mxu0
          %v891 = vadd.f32 %v417, %v890
          %892 = vmatprep.mubr.bf16.mxu0 0
          %893 = vmatmul.mubr.bf16.gmra.mxu0 %v695
          %v894 = vpop.f32.mrf.mxu0
          %v895 = vadd.f32 %v422, %v894
          %v896 = vpop.f32.mrf.mxu0
          %v897 = vadd.f32 %v422, %v896
          %v898 = vpop.f32.mrf.mxu0
          %v899 = vadd.f32 %v427, %v898
          %v900 = vpop.f32.mrf.mxu0
          %v901 = vadd.f32 %v427, %v900
          %902 = vmatprep.mubr.bf16.mxu0 0
          %903 = vmatmul.mubr.bf16.gmra.mxu0 %v696
          %v904 = vpop.f32.mrf.mxu0
          %v905 = vadd.f32 %v432, %v904
          %v906 = vpop.f32.mrf.mxu0
          %v907 = vadd.f32 %v432, %v906
          %v908 = vpop.f32.mrf.mxu0
          %v909 = vadd.f32 %v437, %v908
          %v910 = vpop.f32.mrf.mxu0
          %v911 = vadd.f32 %v437, %v910
          %912 = vmatprep.mubr.bf16.mxu0 0
          %913 = vmatmul.mubr.bf16.gmra.mxu0 %v697
          %v914 = vpop.f32.mrf.mxu0
          %v915 = vadd.f32 %v442, %v914
          %v916 = vpop.f32.mrf.mxu0
          %v917 = vadd.f32 %v442, %v916
          %v918 = vpop.f32.mrf.mxu0
          %v919 = vadd.f32 %v447, %v918
          %v920 = vpop.f32.mrf.mxu0
          %v921 = vadd.f32 %v447, %v920
          %922 = vmatprep.mubr.bf16.mxu0 0
          %923 = vmatmul.mubr.bf16.gmra.mxu0 %v698
          %v924 = vpop.f32.mrf.mxu0
          %v925 = vadd.f32 %v452, %v924
          %v926 = vpop.f32.mrf.mxu0
          %v927 = vadd.f32 %v452, %v926
          %v928 = vpop.f32.mrf.mxu0
          %v929 = vadd.f32 %v457, %v928
          %v930 = vpop.f32.mrf.mxu0
          %v931 = vadd.f32 %v457, %v930
          %932 = vmatprep.mubr.bf16.mxu0 0
          %933 = vmatmul.mubr.bf16.gmra.mxu0 %v699
          %v934 = vpop.f32.mrf.mxu0
          %v935 = vadd.f32 %v462, %v934
          %v936 = vpop.f32.mrf.mxu0
          %v937 = vadd.f32 %v462, %v936
          %v938 = vpop.f32.mrf.mxu0
          %v939 = vadd.f32 %v467, %v938
          %v940 = vpop.f32.mrf.mxu0
          %v941 = vadd.f32 %v467, %v940
          %942 = vmatprep.mubr.bf16.mxu0 0
          %943 = vmatmul.mubr.bf16.gmra.mxu0 %v700
          %v944 = vpop.f32.mrf.mxu0
          %v945 = vadd.f32 %v472, %v944
          %v946 = vpop.f32.mrf.mxu0
          %v947 = vadd.f32 %v472, %v946
          %v948 = vpop.f32.mrf.mxu0
          %v949 = vadd.f32 %v477, %v948
          %v950 = vpop.f32.mrf.mxu0
          %v951 = vadd.f32 %v477, %v950
          %952 = vmatprep.mubr.bf16.mxu0 0
          %953 = vmatmul.mubr.bf16.gmra.mxu0 %v701
          %v954 = vpop.f32.mrf.mxu0
          %v955 = vadd.f32 %v482, %v954
          %v956 = vpop.f32.mrf.mxu0
          %v957 = vadd.f32 %v482, %v956
          %v958 = vpop.f32.mrf.mxu0
          %v959 = vadd.f32 %v487, %v958
          %v960 = vpop.f32.mrf.mxu0
          %v961 = vadd.f32 %v487, %v960
          %962 = vmatprep.mubr.bf16.mxu0 0
          %963 = vmatmul.mubr.bf16.gmra.mxu0 %v702
          %v964 = vpop.f32.mrf.mxu0
          %v965 = vadd.f32 %v492, %v964
          %v966 = vpop.f32.mrf.mxu0
          %v967 = vadd.f32 %v492, %v966
          %v968 = vpop.f32.mrf.mxu0
          %v969 = vadd.f32 %v497, %v968
          %v970 = vpop.f32.mrf.mxu0
          %v971 = vadd.f32 %v497, %v970
          %972 = vmatprep.mubr.bf16.mxu0 0
          %973 = vmatmul.mubr.bf16.gmra.mxu0 %v703
          %v974 = vpop.f32.mrf.mxu0
          %v975 = vadd.f32 %v502, %v974
          %v976 = vpop.f32.mrf.mxu0
          %v977 = vadd.f32 %v502, %v976
          %v978 = vpop.f32.mrf.mxu0
          %v979 = vadd.f32 %v507, %v978
          %v980 = vpop.f32.mrf.mxu0
          %v981 = vadd.f32 %v507, %v980
          %982 = vmatprep.mubr.bf16.mxu0 0
          %983 = vmatmul.mubr.bf16.gmra.mxu0 %v704
          %v984 = vpop.f32.mrf.mxu0
          %v985 = vadd.f32 %v512, %v984
          %v986 = vpop.f32.mrf.mxu0
          %v987 = vadd.f32 %v512, %v986
          %v988 = vpop.f32.mrf.mxu0
          %v989 = vadd.f32 %v517, %v988
          %v990 = vpop.f32.mrf.mxu0
          %v991 = vadd.f32 %v517, %v990
          %992 = vmatprep.mubr.bf16.mxu0 0
          %993 = vmatmul.mubr.bf16.gmra.mxu0 %v705
          %v994 = vpop.f32.mrf.mxu0
          %v995 = vadd.f32 %v522, %v994
          %v996 = vpop.f32.mrf.mxu0
          %v997 = vadd.f32 %v522, %v996
          %v998 = vpop.f32.mrf.mxu0
          %v999 = vadd.f32 %v527, %v998
          %v1000 = vpop.f32.mrf.mxu0
          %v1001 = vadd.f32 %v527, %v1000
          %1002 = vdwg.mxu0
          %v1003 = vpack.c.bf16 %v769, %v765
          %v1004 = vpack.c.bf16 %v771, %v767
          %v1005 = vpack.c.bf16 %v779, %v775
          %v1006 = vpack.c.bf16 %v781, %v777
          %v1007 = vpack.c.bf16 %v789, %v785
          %v1008 = vpack.c.bf16 %v791, %v787
          %v1009 = vpack.c.bf16 %v799, %v795
          %v1010 = vpack.c.bf16 %v801, %v797
          %v1011 = vpack.c.bf16 %v809, %v805
          %v1012 = vpack.c.bf16 %v811, %v807
          %v1013 = vpack.c.bf16 %v819, %v815
          %v1014 = vpack.c.bf16 %v821, %v817
          %v1015 = vpack.c.bf16 %v829, %v825
          %v1016 = vpack.c.bf16 %v831, %v827
          %v1017 = vpack.c.bf16 %v839, %v835
          %v1018 = vpack.c.bf16 %v841, %v837
          %v1019 = vpack.c.bf16 %v849, %v845
          %v1020 = vpack.c.bf16 %v851, %v847
          %v1021 = vpack.c.bf16 %v859, %v855
          %v1022 = vpack.c.bf16 %v861, %v857
          %v1023 = vpack.c.bf16 %v869, %v865
          %v1024 = vpack.c.bf16 %v871, %v867
          %v1025 = vpack.c.bf16 %v879, %v875
          %v1026 = vpack.c.bf16 %v881, %v877
          %v1027 = vpack.c.bf16 %v889, %v885
          %v1028 = vpack.c.bf16 %v891, %v887
          %v1029 = vpack.c.bf16 %v899, %v895
          %v1030 = vpack.c.bf16 %v901, %v897
          %v1031 = vpack.c.bf16 %v909, %v905
          %v1032 = vpack.c.bf16 %v911, %v907
          %v1033 = vpack.c.bf16 %v919, %v915
          %v1034 = vpack.c.bf16 %v921, %v917
          %1035 = vxpose.xlu0.c.b16.start [1/8] %v1019, 128
          %1036 = vxpose.xlu0.c.b16.cont [2/8] %v1021, 128
          %1037 = vxpose.xlu0.c.b16.cont [3/8] %v1023, 128
          %1038 = vxpose.xlu0.c.b16.cont [4/8] %v1025, 128
          %1039 = vxpose.xlu0.c.b16.cont [5/8] %v1027, 128
          %1040 = vxpose.xlu0.c.b16.cont [6/8] %v1029, 128
          %1041 = vxpose.xlu0.c.b16.cont [7/8] %v1031, 128
          %1042 = vxpose.xlu0.c.b16.end [8/8] %v1033, 128
          %v1043 = vpop.trf.xlu0
          %v1044 = vpop.trf.xlu0
          %v1045 = vpop.trf.xlu0
          %v1046 = vpop.trf.xlu0
          %v1047 = vpop.trf.xlu0
          %v1048 = vpop.trf.xlu0
          %v1049 = vpop.trf.xlu0
          %v1050 = vpop.trf.xlu0
          %1051 = vxpose.xlu0.c.b16.start [1/8] %v1020, 128
          %1052 = vxpose.xlu0.c.b16.cont [2/8] %v1022, 128
          %1053 = vxpose.xlu0.c.b16.cont [3/8] %v1024, 128
          %1054 = vxpose.xlu0.c.b16.cont [4/8] %v1026, 128
          %1055 = vxpose.xlu0.c.b16.cont [5/8] %v1028, 128
          %1056 = vxpose.xlu0.c.b16.cont [6/8] %v1030, 128
          %1057 = vxpose.xlu0.c.b16.cont [7/8] %v1032, 128
          %1058 = vxpose.xlu0.c.b16.end [8/8] %v1034, 128
          %v1059 = vpop.trf.xlu0
          %v1060 = vpop.trf.xlu0
          %v1061 = vpop.trf.xlu0
          %v1062 = vpop.trf.xlu0
          %v1063 = vpop.trf.xlu0
          %v1064 = vpop.trf.xlu0
          %v1065 = vpop.trf.xlu0
          %v1066 = vpop.trf.xlu0
          %v1067 = vpack.c.bf16 %v929, %v925
          %v1068 = vpack.c.bf16 %v931, %v927
          %v1069 = vpack.c.bf16 %v939, %v935
          %v1070 = vpack.c.bf16 %v941, %v937
          %v1071 = vpack.c.bf16 %v949, %v945
          %v1072 = vpack.c.bf16 %v951, %v947
          %v1073 = vpack.c.bf16 %v959, %v955
          %v1074 = vpack.c.bf16 %v961, %v957
          %v1075 = vpack.c.bf16 %v969, %v965
          %v1076 = vpack.c.bf16 %v971, %v967
          %v1077 = vpack.c.bf16 %v979, %v975
          %v1078 = vpack.c.bf16 %v981, %v977
          %v1079 = vpack.c.bf16 %v989, %v985
          %v1080 = vpack.c.bf16 %v991, %v987
          %v1081 = vpack.c.bf16 %v999, %v995
          %v1082 = vpack.c.bf16 %v1001, %v997
          %1083 = vmatprep.subr.bf16.mxu0 %v1018
          %1084 = vmatpush1.bf16.msra.mxu0 %v1017
          %1085 = vmatprep.subr.bf16.mxu0 %v1016
          %1086 = vmatpush1.bf16.msra.mxu0 %v1015
          %1087 = vmatprep.subr.bf16.mxu0 %v1014
          %1088 = vmatpush1.bf16.msra.mxu0 %v1013
          %1089 = vmatprep.subr.bf16.mxu0 %v1012
          %1090 = vmatpush1.bf16.msra.mxu0 %v1011
          %1091 = vmatprep.subr.bf16.mxu0 %v1010
          %1092 = vmatpush1.bf16.msra.mxu0 %v1009
          %1093 = vmatprep.subr.bf16.mxu0 %v1008
          %1094 = vmatpush1.bf16.msra.mxu0 %v1007
          %1095 = vmatprep.subr.bf16.mxu0 %v1006
          %1096 = vmatpush1.bf16.msra.mxu0 %v1005
          %1097 = vmatprep.subr.bf16.mxu0 %v1004
          %1098 = vmatpush1.bf16.msra.mxu0 %v1003
          %1099 = vmatprep.subr.bf16.mxu0 0
          %1100 = vmatpush2.bf16.msra.mxu0 0
          %1101 = vmatprep.subr.bf16.mxu0 0
          %1102 = vmatpush2.bf16.msra.mxu0 0
          %1103 = vmatprep.subr.bf16.mxu0 0
          %1104 = vmatpush2.bf16.msra.mxu0 0
          %1105 = vmatprep.subr.bf16.mxu0 0
          %1106 = vmatpush2.bf16.msra.mxu0 0
          %1107 = vmatprep.subr.bf16.mxu0 0
          %1108 = vmatpush2.bf16.msra.mxu0 0
          %1109 = vmatprep.subr.bf16.mxu0 0
          %1110 = vmatpush2.bf16.msra.mxu0 0
          %1111 = vmatprep.subr.bf16.mxu0 0
          %1112 = vmatpush2.bf16.msra.mxu0 0
          %1113 = vmatprep.subr.bf16.mxu0 0
          %1114 = vmatpush2.bf16.msra.mxu0 0
          %1115 = vmatprep.mubr.bf16.mxu0 0
          %1116 = vmatmul.mubr.bf16.gmra.mxu0 %v1043
          %v1117 = vpop.f32.mrf.mxu0
          %v1118 = vadd.f32 0.0, %v1117
          %v1119 = vpop.f32.mrf.mxu0
          %v1120 = vadd.f32 0.0, %v1119
          %v1121 = vpop.f32.mrf.mxu0
          %v1122 = vadd.f32 0.0, %v1121
          %v1123 = vpop.f32.mrf.mxu0
          %v1124 = vadd.f32 0.0, %v1123
          %1125 = vmatprep.mubr.bf16.mxu0 0
          %1126 = vmatmul.mubr.bf16.gmra.mxu0 %v1044
          %v1127 = vpop.f32.mrf.mxu0
          %v1128 = vadd.f32 0.0, %v1127
          %v1129 = vpop.f32.mrf.mxu0
          %v1130 = vadd.f32 0.0, %v1129
          %v1131 = vpop.f32.mrf.mxu0
          %v1132 = vadd.f32 0.0, %v1131
          %v1133 = vpop.f32.mrf.mxu0
          %v1134 = vadd.f32 0.0, %v1133
          %1135 = vmatprep.mubr.bf16.mxu0 0
          %1136 = vmatmul.mubr.bf16.gmra.mxu0 %v1045
          %v1137 = vpop.f32.mrf.mxu0
          %v1138 = vadd.f32 0.0, %v1137
          %v1139 = vpop.f32.mrf.mxu0
          %v1140 = vadd.f32 0.0, %v1139
          %v1141 = vpop.f32.mrf.mxu0
          %v1142 = vadd.f32 0.0, %v1141
          %v1143 = vpop.f32.mrf.mxu0
          %v1144 = vadd.f32 0.0, %v1143
          %1145 = vmatprep.mubr.bf16.mxu0 0
          %1146 = vmatmul.mubr.bf16.gmra.mxu0 %v1046
          %v1147 = vpop.f32.mrf.mxu0
          %v1148 = vadd.f32 0.0, %v1147
          %v1149 = vpop.f32.mrf.mxu0
          %v1150 = vadd.f32 0.0, %v1149
          %v1151 = vpop.f32.mrf.mxu0
          %v1152 = vadd.f32 0.0, %v1151
          %v1153 = vpop.f32.mrf.mxu0
          %v1154 = vadd.f32 0.0, %v1153
          %1155 = vmatprep.mubr.bf16.mxu0 0
          %1156 = vmatmul.mubr.bf16.gmra.mxu0 %v1047
          %v1157 = vpop.f32.mrf.mxu0
          %v1158 = vadd.f32 0.0, %v1157
          %v1159 = vpop.f32.mrf.mxu0
          %v1160 = vadd.f32 0.0, %v1159
          %v1161 = vpop.f32.mrf.mxu0
          %v1162 = vadd.f32 0.0, %v1161
          %v1163 = vpop.f32.mrf.mxu0
          %v1164 = vadd.f32 0.0, %v1163
          %1165 = vmatprep.mubr.bf16.mxu0 0
          %1166 = vmatmul.mubr.bf16.gmra.mxu0 %v1048
          %v1167 = vpop.f32.mrf.mxu0
          %v1168 = vadd.f32 0.0, %v1167
          %v1169 = vpop.f32.mrf.mxu0
          %v1170 = vadd.f32 0.0, %v1169
          %v1171 = vpop.f32.mrf.mxu0
          %v1172 = vadd.f32 0.0, %v1171
          %v1173 = vpop.f32.mrf.mxu0
          %v1174 = vadd.f32 0.0, %v1173
          %1175 = vmatprep.mubr.bf16.mxu0 0
          %1176 = vmatmul.mubr.bf16.gmra.mxu0 %v1049
          %v1177 = vpop.f32.mrf.mxu0
          %v1178 = vadd.f32 0.0, %v1177
          %v1179 = vpop.f32.mrf.mxu0
          %v1180 = vadd.f32 0.0, %v1179
          %v1181 = vpop.f32.mrf.mxu0
          %v1182 = vadd.f32 0.0, %v1181
          %v1183 = vpop.f32.mrf.mxu0
          %v1184 = vadd.f32 0.0, %v1183
          %1185 = vmatprep.mubr.bf16.mxu0 0
          %1186 = vmatmul.mubr.bf16.gmra.mxu0 %v1050
          %v1187 = vpop.f32.mrf.mxu0
          %v1188 = vadd.f32 0.0, %v1187
          %v1189 = vpop.f32.mrf.mxu0
          %v1190 = vadd.f32 0.0, %v1189
          %v1191 = vpop.f32.mrf.mxu0
          %v1192 = vadd.f32 0.0, %v1191
          %v1193 = vpop.f32.mrf.mxu0
          %v1194 = vadd.f32 0.0, %v1193
          %1195 = vmatprep.mubr.bf16.mxu0 0
          %1196 = vmatmul.mubr.bf16.gmra.mxu0 %v1059
          %v1197 = vpop.f32.mrf.mxu0
          %v1198 = vadd.f32 0.0, %v1197
          %v1199 = vpop.f32.mrf.mxu0
          %v1200 = vadd.f32 0.0, %v1199
          %v1201 = vpop.f32.mrf.mxu0
          %v1202 = vadd.f32 0.0, %v1201
          %v1203 = vpop.f32.mrf.mxu0
          %v1204 = vadd.f32 0.0, %v1203
          %1205 = vmatprep.mubr.bf16.mxu0 0
          %1206 = vmatmul.mubr.bf16.gmra.mxu0 %v1060
          %v1207 = vpop.f32.mrf.mxu0
          %v1208 = vadd.f32 0.0, %v1207
          %v1209 = vpop.f32.mrf.mxu0
          %v1210 = vadd.f32 0.0, %v1209
          %v1211 = vpop.f32.mrf.mxu0
          %v1212 = vadd.f32 0.0, %v1211
          %v1213 = vpop.f32.mrf.mxu0
          %v1214 = vadd.f32 0.0, %v1213
          %1215 = vmatprep.mubr.bf16.mxu0 0
          %1216 = vmatmul.mubr.bf16.gmra.mxu0 %v1061
          %v1217 = vpop.f32.mrf.mxu0
          %v1218 = vadd.f32 0.0, %v1217
          %v1219 = vpop.f32.mrf.mxu0
          %v1220 = vadd.f32 0.0, %v1219
          %v1221 = vpop.f32.mrf.mxu0
          %v1222 = vadd.f32 0.0, %v1221
          %v1223 = vpop.f32.mrf.mxu0
          %v1224 = vadd.f32 0.0, %v1223
          %1225 = vmatprep.mubr.bf16.mxu0 0
          %1226 = vmatmul.mubr.bf16.gmra.mxu0 %v1062
          %v1227 = vpop.f32.mrf.mxu0
          %v1228 = vadd.f32 0.0, %v1227
          %v1229 = vpop.f32.mrf.mxu0
          %v1230 = vadd.f32 0.0, %v1229
          %v1231 = vpop.f32.mrf.mxu0
          %v1232 = vadd.f32 0.0, %v1231
          %v1233 = vpop.f32.mrf.mxu0
          %v1234 = vadd.f32 0.0, %v1233
          %1235 = vmatprep.mubr.bf16.mxu0 0
          %1236 = vmatmul.mubr.bf16.gmra.mxu0 %v1063
          %v1237 = vpop.f32.mrf.mxu0
          %v1238 = vadd.f32 0.0, %v1237
          %v1239 = vpop.f32.mrf.mxu0
          %v1240 = vadd.f32 0.0, %v1239
          %v1241 = vpop.f32.mrf.mxu0
          %v1242 = vadd.f32 0.0, %v1241
          %v1243 = vpop.f32.mrf.mxu0
          %v1244 = vadd.f32 0.0, %v1243
          %1245 = vmatprep.mubr.bf16.mxu0 0
          %1246 = vmatmul.mubr.bf16.gmra.mxu0 %v1064
          %v1247 = vpop.f32.mrf.mxu0
          %v1248 = vadd.f32 0.0, %v1247
          %v1249 = vpop.f32.mrf.mxu0
          %v1250 = vadd.f32 0.0, %v1249
          %v1251 = vpop.f32.mrf.mxu0
          %v1252 = vadd.f32 0.0, %v1251
          %v1253 = vpop.f32.mrf.mxu0
          %v1254 = vadd.f32 0.0, %v1253
          %1255 = vmatprep.mubr.bf16.mxu0 0
          %1256 = vmatmul.mubr.bf16.gmra.mxu0 %v1065
          %v1257 = vpop.f32.mrf.mxu0
          %v1258 = vadd.f32 0.0, %v1257
          %v1259 = vpop.f32.mrf.mxu0
          %v1260 = vadd.f32 0.0, %v1259
          %v1261 = vpop.f32.mrf.mxu0
          %v1262 = vadd.f32 0.0, %v1261
          %v1263 = vpop.f32.mrf.mxu0
          %v1264 = vadd.f32 0.0, %v1263
          %1265 = vmatprep.mubr.bf16.mxu0 0
          %1266 = vmatmul.mubr.bf16.gmra.mxu0 %v1066
          %v1267 = vpop.f32.mrf.mxu0
          %v1268 = vadd.f32 0.0, %v1267
          %v1269 = vpop.f32.mrf.mxu0
          %v1270 = vadd.f32 0.0, %v1269
          %v1271 = vpop.f32.mrf.mxu0
          %v1272 = vadd.f32 0.0, %v1271
          %v1273 = vpop.f32.mrf.mxu0
          %v1274 = vadd.f32 0.0, %v1273
          %1275 = vdwg.mxu0
          %v1276 = vmax.f32 %v1118, %v1128
          %v1277 = vmax.f32 %v1122, %v1132
          %v1278 = vmax.f32 %v1276, %v1138
          %v1279 = vmax.f32 %v1277, %v1142
          %v1280 = vmax.f32 %v1278, %v1148
          %v1281 = vmax.f32 %v1279, %v1152
          %v1282 = vmax.f32 %v1280, %v1158
          %v1283 = vmax.f32 %v1281, %v1162
          %v1284 = vmax.f32 %v1282, %v1168
          %v1285 = vmax.f32 %v1283, %v1172
          %v1286 = vmax.f32 %v1284, %v1178
          %v1287 = vmax.f32 %v1285, %v1182
          %v1288 = vmax.f32 %v1286, %v1188
          %v1289 = vmax.f32 %v1287, %v1192
          %v1290 = vmax.f32 %v1288, %v1198
          %v1291 = vmax.f32 %v1289, %v1202
          %v1292 = vmax.f32 %v1290, %v1208
          %v1293 = vmax.f32 %v1291, %v1212
          %v1294 = vmax.f32 %v1292, %v1218
          %v1295 = vmax.f32 %v1293, %v1222
          %v1296 = vmax.f32 %v1294, %v1228
          %v1297 = vmax.f32 %v1295, %v1232
          %v1298 = vmax.f32 %v1296, %v1238
          %v1299 = vmax.f32 %v1297, %v1242
          %v1300 = vmax.f32 %v1298, %v1248
          %v1301 = vmax.f32 %v1299, %v1252
          %v1302 = vmax.f32 %v1300, %v1258
          %v1303 = vmax.f32 %v1301, %v1262
          %v1304 = vmax.f32 %v1302, %v1268
          %v1305 = vmax.f32 %v1303, %v1272
          %v1306 = vmax.f32 %v1304, %v1305
          %v1307 = vrot.slane %v1306, 4
          %v1308 = vmax.f32 %v1306, %v1307
          %v1309 = vrot.slane %v1308, 2
          %v1310 = vmax.f32 %v1308, %v1309
          %v1311 = vrot.slane %v1310, 1
          %v1312 = vmax.f32 %v1310, %v1311
          %v1313 = vmax.f32 %v1120, %v1130
          %v1314 = vmax.f32 %v1124, %v1134
          %v1315 = vmax.f32 %v1313, %v1140
          %v1316 = vmax.f32 %v1314, %v1144
          %v1317 = vmax.f32 %v1315, %v1150
          %v1318 = vmax.f32 %v1316, %v1154
          %v1319 = vmax.f32 %v1317, %v1160
          %v1320 = vmax.f32 %v1318, %v1164
          %v1321 = vmax.f32 %v1319, %v1170
          %v1322 = vmax.f32 %v1320, %v1174
          %v1323 = vmax.f32 %v1321, %v1180
          %v1324 = vmax.f32 %v1322, %v1184
          %v1325 = vmax.f32 %v1323, %v1190
          %v1326 = vmax.f32 %v1324, %v1194
          %v1327 = vmax.f32 %v1325, %v1200
          %v1328 = vmax.f32 %v1326, %v1204
          %v1329 = vmax.f32 %v1327, %v1210
          %v1330 = vmax.f32 %v1328, %v1214
          %v1331 = vmax.f32 %v1329, %v1220
          %v1332 = vmax.f32 %v1330, %v1224
          %v1333 = vmax.f32 %v1331, %v1230
          %v1334 = vmax.f32 %v1332, %v1234
          %v1335 = vmax.f32 %v1333, %v1240
          %v1336 = vmax.f32 %v1334, %v1244
          %v1337 = vmax.f32 %v1335, %v1250
          %v1338 = vmax.f32 %v1336, %v1254
          %v1339 = vmax.f32 %v1337, %v1260
          %v1340 = vmax.f32 %v1338, %v1264
          %v1341 = vmax.f32 %v1339, %v1270
          %v1342 = vmax.f32 %v1340, %v1274
          %v1343 = vmax.f32 %v1341, %v1342
          %v1344 = vrot.slane %v1343, 4
          %v1345 = vmax.f32 %v1343, %v1344
          %v1346 = vrot.slane %v1345, 2
          %v1347 = vmax.f32 %v1345, %v1346
          %v1348 = vrot.slane %v1347, 1
          %v1349 = vmax.f32 %v1347, %v1348
          %v1350 = vsub.f32 %v1118, %v1312
          %v1351 = vsub.f32 %v1120, %v1349
          %v1352 = vsub.f32 %v1122, %v1312
          %v1353 = vsub.f32 %v1124, %v1349
          %v1354 = vsub.f32 %v1128, %v1312
          %v1355 = vsub.f32 %v1130, %v1349
          %v1356 = vsub.f32 %v1132, %v1312
          %v1357 = vsub.f32 %v1134, %v1349
          %v1358 = vsub.f32 %v1138, %v1312
          %v1359 = vsub.f32 %v1140, %v1349
          %v1360 = vsub.f32 %v1142, %v1312
          %v1361 = vsub.f32 %v1144, %v1349
          %v1362 = vsub.f32 %v1148, %v1312
          %v1363 = vsub.f32 %v1150, %v1349
          %v1364 = vsub.f32 %v1152, %v1312
          %v1365 = vsub.f32 %v1154, %v1349
          %v1366 = vsub.f32 %v1158, %v1312
          %v1367 = vsub.f32 %v1160, %v1349
          %v1368 = vsub.f32 %v1162, %v1312
          %v1369 = vsub.f32 %v1164, %v1349
          %v1370 = vsub.f32 %v1168, %v1312
          %v1371 = vsub.f32 %v1170, %v1349
          %v1372 = vsub.f32 %v1172, %v1312
          %v1373 = vsub.f32 %v1174, %v1349
          %v1374 = vsub.f32 %v1178, %v1312
          %v1375 = vsub.f32 %v1180, %v1349
          %v1376 = vsub.f32 %v1182, %v1312
          %v1377 = vsub.f32 %v1184, %v1349
          %v1378 = vsub.f32 %v1188, %v1312
          %v1379 = vsub.f32 %v1190, %v1349
          %v1380 = vsub.f32 %v1192, %v1312
          %v1381 = vsub.f32 %v1194, %v1349
          %v1382 = vsub.f32 %v1198, %v1312
          %v1383 = vsub.f32 %v1200, %v1349
          %v1384 = vsub.f32 %v1202, %v1312
          %v1385 = vsub.f32 %v1204, %v1349
          %v1386 = vsub.f32 %v1208, %v1312
          %v1387 = vsub.f32 %v1210, %v1349
          %v1388 = vsub.f32 %v1212, %v1312
          %v1389 = vsub.f32 %v1214, %v1349
          %v1390 = vsub.f32 %v1218, %v1312
          %v1391 = vsub.f32 %v1220, %v1349
          %v1392 = vsub.f32 %v1222, %v1312
          %v1393 = vsub.f32 %v1224, %v1349
          %v1394 = vsub.f32 %v1228, %v1312
          %v1395 = vsub.f32 %v1230, %v1349
          %v1396 = vsub.f32 %v1232, %v1312
          %v1397 = vsub.f32 %v1234, %v1349
          %v1398 = vsub.f32 %v1238, %v1312
          %v1399 = vsub.f32 %v1240, %v1349
          %v1400 = vsub.f32 %v1242, %v1312
          %v1401 = vsub.f32 %v1244, %v1349
          %v1402 = vsub.f32 %v1248, %v1312
          %v1403 = vsub.f32 %v1250, %v1349
          %v1404 = vsub.f32 %v1252, %v1312
          %v1405 = vsub.f32 %v1254, %v1349
          %v1406 = vsub.f32 %v1258, %v1312
          %v1407 = vsub.f32 %v1260, %v1349
          %v1408 = vsub.f32 %v1262, %v1312
          %v1409 = vsub.f32 %v1264, %v1349
          %v1410 = vsub.f32 %v1268, %v1312
          %v1411 = vsub.f32 %v1270, %v1349
          %v1412 = vsub.f32 %v1272, %v1312
          %v1413 = vsub.f32 %v1274, %v1349
          %v1414 = vmul.f32 %v1350, 1.442695
          %v1415 = vpow.pop %v1414
          %v1416 = vmul.f32 %v1351, 1.442695
          %v1417 = vpow.pop %v1416
          %v1418 = vmul.f32 %v1352, 1.442695
          %v1419 = vpow.pop %v1418
          %v1420 = vmul.f32 %v1353, 1.442695
          %v1421 = vpow.pop %v1420
          %v1422 = vmul.f32 %v1354, 1.442695
          %v1423 = vpow.pop %v1422
          %v1424 = vmul.f32 %v1355, 1.442695
          %v1425 = vpow.pop %v1424
          %v1426 = vmul.f32 %v1356, 1.442695
          %v1427 = vpow.pop %v1426
          %v1428 = vmul.f32 %v1357, 1.442695
          %v1429 = vpow.pop %v1428
          %v1430 = vmul.f32 %v1358, 1.442695
          %v1431 = vpow.pop %v1430
          %v1432 = vmul.f32 %v1359, 1.442695
          %v1433 = vpow.pop %v1432
          %v1434 = vmul.f32 %v1360, 1.442695
          %v1435 = vpow.pop %v1434
          %v1436 = vmul.f32 %v1361, 1.442695
          %v1437 = vpow.pop %v1436
          %v1438 = vmul.f32 %v1362, 1.442695
          %v1439 = vpow.pop %v1438
          %v1440 = vmul.f32 %v1363, 1.442695
          %v1441 = vpow.pop %v1440
          %v1442 = vmul.f32 %v1364, 1.442695
          %v1443 = vpow.pop %v1442
          %v1444 = vmul.f32 %v1365, 1.442695
          %v1445 = vpow.pop %v1444
          %v1446 = vmul.f32 %v1366, 1.442695
          %v1447 = vpow.pop %v1446
          %v1448 = vmul.f32 %v1367, 1.442695
          %v1449 = vpow.pop %v1448
          %v1450 = vmul.f32 %v1368, 1.442695
          %v1451 = vpow.pop %v1450
          %v1452 = vmul.f32 %v1369, 1.442695
          %v1453 = vpow.pop %v1452
          %v1454 = vmul.f32 %v1370, 1.442695
          %v1455 = vpow.pop %v1454
          %v1456 = vmul.f32 %v1371, 1.442695
          %v1457 = vpow.pop %v1456
          %v1458 = vmul.f32 %v1372, 1.442695
          %v1459 = vpow.pop %v1458
          %v1460 = vmul.f32 %v1373, 1.442695
          %v1461 = vpow.pop %v1460
          %v1462 = vmul.f32 %v1374, 1.442695
          %v1463 = vpow.pop %v1462
          %v1464 = vmul.f32 %v1375, 1.442695
          %v1465 = vpow.pop %v1464
          %v1466 = vmul.f32 %v1376, 1.442695
          %v1467 = vpow.pop %v1466
          %v1468 = vmul.f32 %v1377, 1.442695
          %v1469 = vpow.pop %v1468
          %v1470 = vmul.f32 %v1378, 1.442695
          %v1471 = vpow.pop %v1470
          %v1472 = vmul.f32 %v1379, 1.442695
          %v1473 = vpow.pop %v1472
          %v1474 = vmul.f32 %v1380, 1.442695
          %v1475 = vpow.pop %v1474
          %v1476 = vmul.f32 %v1381, 1.442695
          %v1477 = vpow.pop %v1476
          %v1478 = vmul.f32 %v1382, 1.442695
          %v1479 = vpow.pop %v1478
          %v1480 = vmul.f32 %v1383, 1.442695
          %v1481 = vpow.pop %v1480
          %v1482 = vmul.f32 %v1384, 1.442695
          %v1483 = vpow.pop %v1482
          %v1484 = vmul.f32 %v1385, 1.442695
          %v1485 = vpow.pop %v1484
          %v1486 = vmul.f32 %v1386, 1.442695
          %v1487 = vpow.pop %v1486
          %v1488 = vmul.f32 %v1387, 1.442695
          %v1489 = vpow.pop %v1488
          %v1490 = vmul.f32 %v1388, 1.442695
          %v1491 = vpow.pop %v1490
          %v1492 = vmul.f32 %v1389, 1.442695
          %v1493 = vpow.pop %v1492
          %v1494 = vmul.f32 %v1390, 1.442695
          %v1495 = vpow.pop %v1494
          %v1496 = vmul.f32 %v1391, 1.442695
          %v1497 = vpow.pop %v1496
          %v1498 = vmul.f32 %v1392, 1.442695
          %v1499 = vpow.pop %v1498
          %v1500 = vmul.f32 %v1393, 1.442695
          %v1501 = vpow.pop %v1500
          %v1502 = vmul.f32 %v1394, 1.442695
          %v1503 = vpow.pop %v1502
          %v1504 = vmul.f32 %v1395, 1.442695
          %v1505 = vpow.pop %v1504
          %v1506 = vmul.f32 %v1396, 1.442695
          %v1507 = vpow.pop %v1506
          %v1508 = vmul.f32 %v1397, 1.442695
          %v1509 = vpow.pop %v1508
          %v1510 = vmul.f32 %v1398, 1.442695
          %v1511 = vpow.pop %v1510
          %v1512 = vmul.f32 %v1399, 1.442695
          %v1513 = vpow.pop %v1512
          %v1514 = vmul.f32 %v1400, 1.442695
          %v1515 = vpow.pop %v1514
          %v1516 = vmul.f32 %v1401, 1.442695
          %v1517 = vpow.pop %v1516
          %v1518 = vmul.f32 %v1402, 1.442695
          %v1519 = vpow.pop %v1518
          %v1520 = vmul.f32 %v1403, 1.442695
          %v1521 = vpow.pop %v1520
          %v1522 = vmul.f32 %v1404, 1.442695
          %v1523 = vpow.pop %v1522
          %v1524 = vmul.f32 %v1405, 1.442695
          %v1525 = vpow.pop %v1524
          %v1526 = vmul.f32 %v1406, 1.442695
          %v1527 = vpow.pop %v1526
          %v1528 = vmul.f32 %v1407, 1.442695
          %v1529 = vpow.pop %v1528
          %v1530 = vmul.f32 %v1408, 1.442695
          %v1531 = vpow.pop %v1530
          %v1532 = vmul.f32 %v1409, 1.442695
          %v1533 = vpow.pop %v1532
          %v1534 = vmul.f32 %v1410, 1.442695
          %v1535 = vpow.pop %v1534
          %v1536 = vmul.f32 %v1411, 1.442695
          %v1537 = vpow.pop %v1536
          %v1538 = vmul.f32 %v1412, 1.442695
          %v1539 = vpow.pop %v1538
          %v1540 = vmul.f32 %v1413, 1.442695
          %v1541 = vpow.pop %v1540
          %v1542 = vadd.f32 %v1415, %v1419
          %v1543 = vadd.f32 %v1542, %v1423
          %v1544 = vadd.f32 %v1543, %v1427
          %v1545 = vadd.f32 %v1544, %v1431
          %v1546 = vadd.f32 %v1545, %v1435
          %v1547 = vadd.f32 %v1546, %v1439
          %v1548 = vadd.f32 %v1547, %v1443
          %v1549 = vadd.f32 %v1548, %v1447
          %v1550 = vadd.f32 %v1549, %v1451
          %v1551 = vadd.f32 %v1550, %v1455
          %v1552 = vadd.f32 %v1551, %v1459
          %v1553 = vadd.f32 %v1552, %v1463
          %v1554 = vadd.f32 %v1553, %v1467
          %v1555 = vadd.f32 %v1554, %v1471
          %v1556 = vadd.f32 %v1555, %v1475
          %v1557 = vadd.f32 %v1556, %v1479
          %v1558 = vadd.f32 %v1557, %v1483
          %v1559 = vadd.f32 %v1558, %v1487
          %v1560 = vadd.f32 %v1559, %v1491
          %v1561 = vadd.f32 %v1560, %v1495
          %v1562 = vadd.f32 %v1561, %v1499
          %v1563 = vadd.f32 %v1562, %v1503
          %v1564 = vadd.f32 %v1563, %v1507
          %v1565 = vadd.f32 %v1564, %v1511
          %v1566 = vadd.f32 %v1565, %v1515
          %v1567 = vadd.f32 %v1566, %v1519
          %v1568 = vadd.f32 %v1567, %v1523
          %v1569 = vadd.f32 %v1568, %v1527
          %v1570 = vadd.f32 %v1569, %v1531
          %v1571 = vadd.f32 %v1570, %v1535
          %v1572 = vadd.f32 %v1571, %v1539
          %v1573 = vrot.slane %v1572, 4
          %v1574 = vadd.f32 %v1572, %v1573
          %v1575 = vrot.slane %v1574, 2
          %v1576 = vadd.f32 %v1574, %v1575
          %v1577 = vrot.slane %v1576, 1
          %v1578 = vadd.f32 %v1576, %v1577
          %v1579 = vadd.f32 %v1417, %v1421
          %v1580 = vadd.f32 %v1579, %v1425
          %v1581 = vadd.f32 %v1580, %v1429
          %v1582 = vadd.f32 %v1581, %v1433
          %v1583 = vadd.f32 %v1582, %v1437
          %v1584 = vadd.f32 %v1583, %v1441
          %v1585 = vadd.f32 %v1584, %v1445
          %v1586 = vadd.f32 %v1585, %v1449
          %v1587 = vadd.f32 %v1586, %v1453
          %v1588 = vadd.f32 %v1587, %v1457
          %v1589 = vadd.f32 %v1588, %v1461
          %v1590 = vadd.f32 %v1589, %v1465
          %v1591 = vadd.f32 %v1590, %v1469
          %v1592 = vadd.f32 %v1591, %v1473
          %v1593 = vadd.f32 %v1592, %v1477
          %v1594 = vadd.f32 %v1593, %v1481
          %v1595 = vadd.f32 %v1594, %v1485
          %v1596 = vadd.f32 %v1595, %v1489
          %v1597 = vadd.f32 %v1596, %v1493
          %v1598 = vadd.f32 %v1597, %v1497
          %v1599 = vadd.f32 %v1598, %v1501
          %v1600 = vadd.f32 %v1599, %v1505
          %v1601 = vadd.f32 %v1600, %v1509
          %v1602 = vadd.f32 %v1601, %v1513
          %v1603 = vadd.f32 %v1602, %v1517
          %v1604 = vadd.f32 %v1603, %v1521
          %v1605 = vadd.f32 %v1604, %v1525
          %v1606 = vadd.f32 %v1605, %v1529
          %v1607 = vadd.f32 %v1606, %v1533
          %v1608 = vadd.f32 %v1607, %v1537
          %v1609 = vadd.f32 %v1608, %v1541
          %v1610 = vrot.slane %v1609, 4
          %v1611 = vadd.f32 %v1609, %v1610
          %v1612 = vrot.slane %v1611, 2
          %v1613 = vadd.f32 %v1611, %v1612
          %v1614 = vrot.slane %v1613, 1
          %v1615 = vadd.f32 %v1613, %v1614
          %v1616 = vpack.c.bf16 %v1419, %v1415
          %v1617 = vpack.c.bf16 %v1421, %v1417
          %v1618 = vpack.c.bf16 %v1427, %v1423
          %v1619 = vpack.c.bf16 %v1429, %v1425
          %v1620 = vpack.c.bf16 %v1435, %v1431
          %v1621 = vpack.c.bf16 %v1437, %v1433
          %v1622 = vpack.c.bf16 %v1443, %v1439
          %v1623 = vpack.c.bf16 %v1445, %v1441
          %v1624 = vpack.c.bf16 %v1451, %v1447
          %v1625 = vpack.c.bf16 %v1453, %v1449
          %v1626 = vpack.c.bf16 %v1459, %v1455
          %v1627 = vpack.c.bf16 %v1461, %v1457
          %v1628 = vpack.c.bf16 %v1467, %v1463
          %v1629 = vpack.c.bf16 %v1469, %v1465
          %v1630 = vpack.c.bf16 %v1475, %v1471
          %v1631 = vpack.c.bf16 %v1477, %v1473
          %v1632 = vpack.c.bf16 %v1483, %v1479
          %v1633 = vpack.c.bf16 %v1485, %v1481
          %v1634 = vpack.c.bf16 %v1491, %v1487
          %v1635 = vpack.c.bf16 %v1493, %v1489
          %v1636 = vpack.c.bf16 %v1499, %v1495
          %v1637 = vpack.c.bf16 %v1501, %v1497
          %v1638 = vpack.c.bf16 %v1507, %v1503
          %v1639 = vpack.c.bf16 %v1509, %v1505
          %v1640 = vpack.c.bf16 %v1515, %v1511
          %v1641 = vpack.c.bf16 %v1517, %v1513
          %v1642 = vpack.c.bf16 %v1523, %v1519
          %v1643 = vpack.c.bf16 %v1525, %v1521
          %v1644 = vpack.c.bf16 %v1531, %v1527
          %v1645 = vpack.c.bf16 %v1533, %v1529
          %v1646 = vpack.c.bf16 %v1539, %v1535
          %v1647 = vpack.c.bf16 %v1541, %v1537
          %1648 = vmatprep.subr.bf16.mxu0 %v1631
          %1649 = vmatpush1.bf16.msra.mxu0 %v1630
          %1650 = vmatprep.subr.bf16.mxu0 %v1629
          %1651 = vmatpush1.bf16.msra.mxu0 %v1628
          %1652 = vmatprep.subr.bf16.mxu0 %v1627
          %1653 = vmatpush1.bf16.msra.mxu0 %v1626
          %1654 = vmatprep.subr.bf16.mxu0 %v1625
          %1655 = vmatpush1.bf16.msra.mxu0 %v1624
          %1656 = vmatprep.subr.bf16.mxu0 %v1623
          %1657 = vmatpush1.bf16.msra.mxu0 %v1622
          %1658 = vmatprep.subr.bf16.mxu0 %v1621
          %1659 = vmatpush1.bf16.msra.mxu0 %v1620
          %1660 = vmatprep.subr.bf16.mxu0 %v1619
          %1661 = vmatpush1.bf16.msra.mxu0 %v1618
          %1662 = vmatprep.subr.bf16.mxu0 %v1617
          %1663 = vmatpush1.bf16.msra.mxu0 %v1616
          %1664 = vmatprep.subr.bf16.mxu0 %v1647
          %1665 = vmatpush2.bf16.msra.mxu0 %v1646
          %1666 = vmatprep.subr.bf16.mxu0 %v1645
          %1667 = vmatpush2.bf16.msra.mxu0 %v1644
          %1668 = vmatprep.subr.bf16.mxu0 %v1643
          %1669 = vmatpush2.bf16.msra.mxu0 %v1642
          %1670 = vmatprep.subr.bf16.mxu0 %v1641
          %1671 = vmatpush2.bf16.msra.mxu0 %v1640
          %1672 = vmatprep.subr.bf16.mxu0 %v1639
          %1673 = vmatpush2.bf16.msra.mxu0 %v1638
          %1674 = vmatprep.subr.bf16.mxu0 %v1637
          %1675 = vmatpush2.bf16.msra.mxu0 %v1636
          %1676 = vmatprep.subr.bf16.mxu0 %v1635
          %1677 = vmatpush2.bf16.msra.mxu0 %v1634
          %1678 = vmatprep.subr.bf16.mxu0 %v1633
          %1679 = vmatpush2.bf16.msra.mxu0 %v1632
          %1680 = vmatprep.mubr.bf16.mxu0 %v1068
          %1681 = vmatmul.mubr.bf16.gmra.mxu0 %v1067
          %v1682 = vpop.f32.mrf.mxu0
          %v1683 = vadd.f32 0.0, %v1682
          %v1684 = vpop.f32.mrf.mxu0
          %v1685 = vadd.f32 0.0, %v1684
          %v1686 = vpop.f32.mrf.mxu0
          %v1687 = vadd.f32 0.0, %v1686
          %v1688 = vpop.f32.mrf.mxu0
          %v1689 = vadd.f32 0.0, %v1688
          %1690 = vmatprep.mubr.bf16.mxu0 %v1070
          %1691 = vmatmul.mubr.bf16.gmra.mxu0 %v1069
          %v1692 = vpop.f32.mrf.mxu0
          %v1693 = vadd.f32 0.0, %v1692
          %v1694 = vpop.f32.mrf.mxu0
          %v1695 = vadd.f32 0.0, %v1694
          %v1696 = vpop.f32.mrf.mxu0
          %v1697 = vadd.f32 0.0, %v1696
          %v1698 = vpop.f32.mrf.mxu0
          %v1699 = vadd.f32 0.0, %v1698
          %1700 = vmatprep.mubr.bf16.mxu0 %v1072
          %1701 = vmatmul.mubr.bf16.gmra.mxu0 %v1071
          %v1702 = vpop.f32.mrf.mxu0
          %v1703 = vadd.f32 0.0, %v1702
          %v1704 = vpop.f32.mrf.mxu0
          %v1705 = vadd.f32 0.0, %v1704
          %v1706 = vpop.f32.mrf.mxu0
          %v1707 = vadd.f32 0.0, %v1706
          %v1708 = vpop.f32.mrf.mxu0
          %v1709 = vadd.f32 0.0, %v1708
          %1710 = vmatprep.mubr.bf16.mxu0 %v1074
          %1711 = vmatmul.mubr.bf16.gmra.mxu0 %v1073
          %v1712 = vpop.f32.mrf.mxu0
          %v1713 = vadd.f32 0.0, %v1712
          %v1714 = vpop.f32.mrf.mxu0
          %v1715 = vadd.f32 0.0, %v1714
          %v1716 = vpop.f32.mrf.mxu0
          %v1717 = vadd.f32 0.0, %v1716
          %v1718 = vpop.f32.mrf.mxu0
          %v1719 = vadd.f32 0.0, %v1718
          %1720 = vmatprep.mubr.bf16.mxu0 %v1076
          %1721 = vmatmul.mubr.bf16.gmra.mxu0 %v1075
          %v1722 = vpop.f32.mrf.mxu0
          %v1723 = vadd.f32 0.0, %v1722
          %v1724 = vpop.f32.mrf.mxu0
          %v1725 = vadd.f32 0.0, %v1724
          %v1726 = vpop.f32.mrf.mxu0
          %v1727 = vadd.f32 0.0, %v1726
          %v1728 = vpop.f32.mrf.mxu0
          %v1729 = vadd.f32 0.0, %v1728
          %1730 = vmatprep.mubr.bf16.mxu0 %v1078
          %1731 = vmatmul.mubr.bf16.gmra.mxu0 %v1077
          %v1732 = vpop.f32.mrf.mxu0
          %v1733 = vadd.f32 0.0, %v1732
          %v1734 = vpop.f32.mrf.mxu0
          %v1735 = vadd.f32 0.0, %v1734
          %v1736 = vpop.f32.mrf.mxu0
          %v1737 = vadd.f32 0.0, %v1736
          %v1738 = vpop.f32.mrf.mxu0
          %v1739 = vadd.f32 0.0, %v1738
          %1740 = vmatprep.mubr.bf16.mxu0 %v1080
          %1741 = vmatmul.mubr.bf16.gmra.mxu0 %v1079
          %v1742 = vpop.f32.mrf.mxu0
          %v1743 = vadd.f32 0.0, %v1742
          %v1744 = vpop.f32.mrf.mxu0
          %v1745 = vadd.f32 0.0, %v1744
          %v1746 = vpop.f32.mrf.mxu0
          %v1747 = vadd.f32 0.0, %v1746
          %v1748 = vpop.f32.mrf.mxu0
          %v1749 = vadd.f32 0.0, %v1748
          %1750 = vmatprep.mubr.bf16.mxu0 %v1082
          %1751 = vmatmul.mubr.bf16.gmra.mxu0 %v1081
          %v1752 = vpop.f32.mrf.mxu0
          %v1753 = vadd.f32 0.0, %v1752
          %v1754 = vpop.f32.mrf.mxu0
          %v1755 = vadd.f32 0.0, %v1754
          %v1756 = vpop.f32.mrf.mxu0
          %v1757 = vadd.f32 0.0, %v1756
          %v1758 = vpop.f32.mrf.mxu0
          %v1759 = vadd.f32 0.0, %v1758
          %1760 = vdwg.mxu0
          %v1761 = vrcp.pop %v1578
          %v1762 = vrcp.pop %v1615
          %v1763 = vmul.f32 %v1683, %v1761
          %v1764 = vmul.f32 %v1685, %v1762
          %v1765 = vmul.f32 %v1687, %v1761
          %v1766 = vmul.f32 %v1689, %v1762
          %v1767 = vmul.f32 %v1693, %v1761
          %v1768 = vmul.f32 %v1695, %v1762
          %v1769 = vmul.f32 %v1697, %v1761
          %v1770 = vmul.f32 %v1699, %v1762
          %v1771 = vmul.f32 %v1703, %v1761
          %v1772 = vmul.f32 %v1705, %v1762
          %v1773 = vmul.f32 %v1707, %v1761
          %v1774 = vmul.f32 %v1709, %v1762
          %v1775 = vmul.f32 %v1713, %v1761
          %v1776 = vmul.f32 %v1715, %v1762
          %v1777 = vmul.f32 %v1717, %v1761
          %v1778 = vmul.f32 %v1719, %v1762
          %v1779 = vmul.f32 %v1723, %v1761
          %v1780 = vmul.f32 %v1725, %v1762
          %v1781 = vmul.f32 %v1727, %v1761
          %v1782 = vmul.f32 %v1729, %v1762
          %v1783 = vmul.f32 %v1733, %v1761
          %v1784 = vmul.f32 %v1735, %v1762
          %v1785 = vmul.f32 %v1737, %v1761
          %v1786 = vmul.f32 %v1739, %v1762
          %v1787 = vmul.f32 %v1743, %v1761
          %v1788 = vmul.f32 %v1745, %v1762
          %v1789 = vmul.f32 %v1747, %v1761
          %v1790 = vmul.f32 %v1749, %v1762
          %v1791 = vmul.f32 %v1753, %v1761
          %v1792 = vmul.f32 %v1755, %v1762
          %v1793 = vmul.f32 %v1757, %v1761
          %v1794 = vmul.f32 %v1759, %v1762
          %s1795 = smul.addr %s535, 8
          %s1796 = scalar_lea.vmem %s189, %s1795 [#allocation5]
          %1797 = vst [vmem:[%s1796] sm:$0xff] %v1763
          %1798 = vst [vmem:[%s1796 + $0x8] sm:$0xff] %v1764
          %1799 = vst [vmem:[%s1796 + $0x10] sm:$0xff] %v1765
          %1800 = vst [vmem:[%s1796 + $0x18] sm:$0xff] %v1766
          %1801 = vst [vmem:[%s1796 + $0x20] sm:$0xff] %v1767
          %1802 = vst [vmem:[%s1796 + $0x28] sm:$0xff] %v1768
          %1803 = vst [vmem:[%s1796 + $0x30] sm:$0xff] %v1769
          %1804 = vst [vmem:[%s1796 + $0x38] sm:$0xff] %v1770
          %1805 = vst [vmem:[%s1796 + $0x40] sm:$0xff] %v1771
          %1806 = vst [vmem:[%s1796 + $0x48] sm:$0xff] %v1772
          %1807 = vst [vmem:[%s1796 + $0x50] sm:$0xff] %v1773
          %1808 = vst [vmem:[%s1796 + $0x58] sm:$0xff] %v1774
          %1809 = vst [vmem:[%s1796 + $0x60] sm:$0xff] %v1775
          %1810 = vst [vmem:[%s1796 + $0x68] sm:$0xff] %v1776
          %1811 = vst [vmem:[%s1796 + $0x70] sm:$0xff] %v1777
          %1812 = vst [vmem:[%s1796 + $0x78] sm:$0xff] %v1778
          %1813 = vst [vmem:[%s1796 + $0x80] sm:$0xff] %v1779
          %1814 = vst [vmem:[%s1796 + $0x88] sm:$0xff] %v1780
          %1815 = vst [vmem:[%s1796 + $0x90] sm:$0xff] %v1781
          %1816 = vst [vmem:[%s1796 + $0x98] sm:$0xff] %v1782
          %1817 = vst [vmem:[%s1796 + $0xa0] sm:$0xff] %v1783
          %1818 = vst [vmem:[%s1796 + $0xa8] sm:$0xff] %v1784
          %1819 = vst [vmem:[%s1796 + $0xb0] sm:$0xff] %v1785
          %1820 = vst [vmem:[%s1796 + $0xb8] sm:$0xff] %v1786
          %1821 = vst [vmem:[%s1796 + $0xc0] sm:$0xff] %v1787
          %1822 = vst [vmem:[%s1796 + $0xc8] sm:$0xff] %v1788
          %1823 = vst [vmem:[%s1796 + $0xd0] sm:$0xff] %v1789
          %1824 = vst [vmem:[%s1796 + $0xd8] sm:$0xff] %v1790
          %1825 = vst [vmem:[%s1796 + $0xe0] sm:$0xff] %v1791
          %1826 = vst [vmem:[%s1796 + $0xe8] sm:$0xff] %v1792
          %1827 = vst [vmem:[%s1796 + $0xf0] sm:$0xff] %v1793
          %1828 = vst [vmem:[%s1796 + $0xf8] sm:$0xff] %v1794
        $region41: #{tpu_custom_call.1} parent=31 // loop_footer
          %s534 = sadd.s32 1, %s530
        $region42: #{tpu_custom_call.1} parent=31 // loop_footer_branch
          %529 = sbr.rel target = $region38
        $region43: #{tpu_custom_call.1} parent=31 // loop_exit
          _
        %s1829 = sand.u32 %s96, 1
        %s1830 = scalar_lea.sflag [#allocation4], %s1829
        %s1831 = sand.u32 %s96, 1
        %s1832 = smul.addr %s1831, 512
        %s1833 = scalar_lea.vmem [#allocation5], %s1832
        // Predicated region
        $region44: #{tpu_custom_call.1} parent=31 // pred_check
          %p1834 = pneg %p106
        $region45: #{tpu_custom_call.1} parent=31 // pred_check_branch
          %1836 = sbr.rel (%p1834) target = $region47
        $region46: #{tpu_custom_call.1} parent=31 // pred_region
          %s1837 = smul.u32 2, %s20
          %s1839 = ssub.s32 8192, 8192
          %1840 = vsyncadd %s1830, %s1839
          %s1841 = smul.addr %s1837, 32
          %s1842 = smul.addr %s1841, 128
          %s1843 = scalar_lea.hbm %s3, %s1842
          %s1844 = sshll.u32 %s1833, 4
          %s1845 = int_to_ptr.vmem [resolvable:$true] %s1844
          %1850 = dma.vmem_to_hbm [thread:$0]  %s1845, 8192, %s1843, %s1830, 256, 256, 16
        $region47: #{tpu_custom_call.1} parent=31 // pred_fallthru
          _
      $region32: #{tpu_custom_call.1} parent=5 // pred_fallthru
        _
      %p1851 = scmp.le.s32.totalorder 2, %s15
      // Predicated region
      $region48: #{tpu_custom_call.1} parent=5 // pred_check
        %p1852 = pneg %p1851
      $region49: #{tpu_custom_call.1} parent=5 // pred_check_branch
        %1854 = sbr.rel (%p1852) target = $region51
      $region50: #{tpu_custom_call.1} parent=5 // pred_region
        %s1855 = ssub.s32 %s15, 2
        // Predicated region
        $region52: #{tpu_custom_call.1} parent=50 // pred_check
          %p1856 = pneg %p112
        $region53: #{tpu_custom_call.1} parent=50 // pred_check_branch
          %1858 = sbr.rel (%p1856) target = $region55
        $region54: #{tpu_custom_call.1} parent=50 // pred_region
          %s1859 = sand.u32 %s97, 1
          %s1860 = scalar_lea.sflag [#allocation4], %s1859
          %s1861 = sand.u32 %s97, 1
          %s1862 = smul.addr %s1861, 512
          %s1863 = scalar_lea.vmem [#allocation5], %s1862
          %1864 = dma.done %s1860, 8192
        $region55: #{tpu_custom_call.1} parent=50 // pred_fallthru
          _
      $region51: #{tpu_custom_call.1} parent=5 // pred_fallthru
        _
    $region6: #{tpu_custom_call.1} parent=1 // loop_footer
      %s19 = sadd.s32 1, %s15
    $region7: #{tpu_custom_call.1} parent=1 // loop_footer_branch
      %14 = sbr.rel target = $region3
    $region8: #{tpu_custom_call.1} parent=1 // loop_exit
      _
    %1865 = vsyncpa [#allocation3], 1
    %s1866 = scalar_lea.sflag [#allocation3], 1
    %1867 = vsyncpa %s1866, 1
    %1868 = vsyncpa [#allocation4], 1
    %s1869 = scalar_lea.sflag [#allocation4], 1
    %1870 = vsyncpa %s1869, 1

</llo_original>
